<compile_context>
chip_gen: v7x
topology: tpu7x:2x2x1
jax: 0.10.0
libtpu: 0.0.40
codegen_flags: <defaults>
</compile_context>

<pallas_src>
import functools

import jax
import jax.numpy as jnp
from jax.experimental import pallas as pl
from jax.experimental.pallas import tpu as pltpu


def r3d_attention_kernel(x_ref, wqkv_ref, bqkv_ref, wo_ref, bo_ref, o_ref,
                         *, num_heads, head_size, kv_chunk):
    """One grid step handles Bt (batch*view) elements.

    x_ref    : (Bt, P, H)      input patches for this block
    wqkv_ref : (H, 3H)         qkv projection weight (transposed to in,out)
    bqkv_ref : (1, 3H)         qkv projection bias
    wo_ref   : (nh, hs, H)     output projection weight, split per head (in,out)
    bo_ref   : (1, H)          output projection bias
    o_ref    : (Bt, P, H)      output
    """
    Bt, P, H = x_ref.shape
    nh, hs = num_heads, head_size
    cdt = x_ref.dtype                       # MXU operand dtype (f32 accumulation)

    x2 = x_ref[...].reshape(Bt * P, H)

    # (1) Fused QKV projection: one MXU matmul, M=Bt*P, K=H, N=3H (full M/K/N).
    qkv = jnp.dot(x2, wqkv_ref[...], preferred_element_type=jnp.float32)
    qkv = qkv + bqkv_ref[...].astype(jnp.float32)            # (Bt*P, 3H) f32

    scale = 1.0 / (hs ** 0.5)
    n_chunks = (P + kv_chunk - 1) // kv_chunk

    # (2)-(4) Per-head attention + fused output projection.  Heads are processed by a
    # static loop: no (nh*Bt, ...) batched tensors and no concatenate are ever built;
    # each head takes one lane slice of the qkv block and accumulates its output
    # contribution straight into one (Bt*P, H) f32 accumulator on the MXU.
    out = jnp.zeros((Bt * P, H), dtype=jnp.float32)
    for h in range(nh):
        qh = (qkv[:, h * hs:(h + 1) * hs] * scale).reshape(Bt, P, hs).astype(cdt)
        kh = qkv[:, H + h * hs:H + (h + 1) * hs].reshape(Bt, P, hs).astype(cdt)
        vh = qkv[:, 2 * H + h * hs:2 * H + (h + 1) * hs].reshape(Bt, P, hs).astype(cdt)

        # Flash-style online softmax over KV chunks; normalization is deferred so the
        # reciprocal multiply touches hs lanes instead of P lanes per row.
        m_i = jnp.full((Bt, P, 1), -jnp.inf, dtype=jnp.float32)
        l_i = jnp.zeros((Bt, P, 1), dtype=jnp.float32)
        acc = jnp.zeros((Bt, P, hs), dtype=jnp.float32)
        for c in range(n_chunks):
            lo = c * kv_chunk
            hi = min(P, lo + kv_chunk)
            kc = kh[:, lo:hi, :]
            vc = vh[:, lo:hi, :]
            s = jnp.einsum('bqd,bkd->bqk', qh, kc,
                           preferred_element_type=jnp.float32)   # (Bt, P, hi-lo) f32
            m_new = jnp.maximum(m_i, jnp.max(s, axis=-1, keepdims=True))
            alpha = jnp.exp(m_i - m_new)
            p = jnp.exp(s - m_new)
            l_i = alpha * l_i + jnp.sum(p, axis=-1, keepdims=True)
            acc = alpha * acc + jnp.einsum('bqk,bkd->bqd', p.astype(cdt), vc,
                                           preferred_element_type=jnp.float32)
            m_i = m_new
        zh = acc * pl.reciprocal(l_i, approx=True)               # (Bt, P, hs) f32

        # Fused head-sum: contract this head's z with its (hs, H) block of Wo and
        # accumulate — no (nh, Bt*P, H) intermediate, no head concat/lane shuffle.
        out = out + jnp.dot(zh.reshape(Bt * P, hs).astype(cdt), wo_ref[h],
                            preferred_element_type=jnp.float32)

    out = out + bo_ref[...].astype(jnp.float32)
    o_ref[...] = out.reshape(Bt, P, H).astype(o_ref.dtype)


def _hw_budget():
    """Generation-dependent VMEM budget and per-step row target."""
    vmem_phys = 64 * 1024 * 1024            # conservative default: v7x has 64 MiB / TC
    try:
        vmem_phys = int(pltpu.get_tpu_info().vmem_capacity_bytes)
    except Exception:
        pass
    vmem_limit = int(min(vmem_phys * 3 // 4, 100 * 1024 * 1024))
    target_rows = 512 if vmem_phys >= 96 * 1024 * 1024 else 256
    return vmem_limit, target_rows


def _pick_bv_block(bv, p, target_rows):
    """Largest divisor of bv with bt*p <= target_rows, keeping the grid >= 2 steps."""
    cap = max(1, target_rows // max(p, 1))
    if bv >= 2:
        cap = min(cap, bv // 2)   # >=2 grid steps: v7x megacore sharding + pipeline overlap
    bt = 1
    for d in range(1, bv + 1):
        if bv % d == 0 and d <= cap:
            bt = d
    return bt


def r3d_attention(x, w_qkv, b_qkv, w_out, b_out, *, num_heads,
                  bv_block=None, kv_chunk=None):
    """x: (BV, P, H); w_qkv: (3H, H) torch-style (out,in); w_out: (H, H) (out,in)."""
    BV, P, H = x.shape
    head_size = H // num_heads

    # Pre-transpose torch-style (out,in) weights to (in,out) for the kernel.
    wqkv_t = jnp.transpose(w_qkv)                              # (H, 3H)
    bqkv2 = b_qkv.reshape(1, 3 * H)
    # Output projection weight split per head: wo_heads[h, d, o] = w_out[o, h*hs+d].
    wo_heads = jnp.transpose(w_out).reshape(num_heads, head_size, H)
    bo2 = b_out.reshape(1, H)

    vmem_limit, target_rows = _hw_budget()
    bt = bv_block if bv_block is not None else _pick_bv_block(BV, P, target_rows)
    assert BV % bt == 0, "bv_block must divide batch*view"
    ck = kv_chunk if kv_chunk is not None else min(P, 512)

    # TODO(synk): pad H to a multiple of 128 / P to a multiple of 8 at this level for
    #             fully lane/sublane-dense tiles; realistic model dims already are.
    # TODO(synk): single-buffer the resident weight specs (pipeline_mode=pl.Buffered(1))
    #             to reclaim one weight copy of VMEM on v7x.

    kernel = functools.partial(r3d_attention_kernel, num_heads=num_heads,
                               head_size=head_size, kv_chunk=ck)

    return pl.pallas_call(
        kernel,
        out_shape=jax.ShapeDtypeStruct((BV, P, H), x.dtype),
        grid_spec=pltpu.PrefetchScalarGridSpec(
            num_scalar_prefetch=0,
            grid=(BV // bt,),
            in_specs=[
                pl.BlockSpec((bt, P, H), lambda i: (i, 0, 0)),                 # x tile
                pl.BlockSpec((H, 3 * H), lambda i: (0, 0)),                    # Wqkv^T
                pl.BlockSpec((1, 3 * H), lambda i: (0, 0)),                    # bqkv
                pl.BlockSpec((num_heads, head_size, H), lambda i: (0, 0, 0)),  # Wo heads
                pl.BlockSpec((1, H), lambda i: (0, 0)),                        # bout
            ],
            out_specs=pl.BlockSpec((bt, P, H), lambda i: (i, 0, 0)),
        ),
        compiler_params=pltpu.CompilerParams(
            # "parallel" over BV tiles shards across v7x's two TensorCores; harmless
            # on single-TC v5e/v6e where the grid is a serial loop.
            dimension_semantics=("parallel",),
            # Generation-dependent VMEM budget (under physical capacity).
            vmem_limit_bytes=vmem_limit,
        ),
    )(x, wqkv_t, bqkv2, wo_heads, bo2)


def r3d_attention_ref(x, w_qkv, b_qkv, w_out, b_out, *, num_heads):
    """Pure-JAX reference mirroring the PyTorch forward (eval mode)."""
    BV, P, H = x.shape
    hs = H // num_heads
    qkv = x @ w_qkv.T + b_qkv                               # (BV, P, 3H)
    qkv = qkv.reshape(BV, P, 3, num_heads, hs).transpose(2, 0, 3, 1, 4)
    q, k, v = qkv[0], qkv[1], qkv[2]                        # (BV, nh, P, hs)
    s = jnp.einsum('bhpd,bhqd->bhpq', q, k) / (hs ** 0.5)
    attn = jax.nn.softmax(s, axis=-1)
    z = jnp.einsum('bhpq,bhqd->bhpd', attn, v)              # (BV, nh, P, hs)
    z = z.transpose(0, 2, 1, 3).reshape(BV, P, H)
    return z @ w_out.T + b_out


if __name__ == "__main__":
    # Small, module-consistent shapes: batch*view=2, patches=8, hidden=32, heads=4.
    BV, P, HIDDEN, NUM_HEADS = 2, 8, 32, 4

    key = jax.random.PRNGKey(0)
    kx, kw1, kb1, kw2, kb2 = jax.random.split(key, 5)

    x = jax.random.normal(kx, (BV, P, HIDDEN), dtype=jnp.float32)

    # Deterministic parameter init (torch nn.Linear shapes: weight (out,in), bias (out,)).
    w_qkv = jax.random.normal(kw1, (3 * HIDDEN, HIDDEN), dtype=jnp.float32) * 0.05
    b_qkv = jax.random.normal(kb1, (3 * HIDDEN,), dtype=jnp.float32) * 0.05
    w_out = jax.random.normal(kw2, (HIDDEN, HIDDEN), dtype=jnp.float32) * 0.05
    b_out = jax.random.normal(kb2, (HIDDEN,), dtype=jnp.float32) * 0.05

    out = r3d_attention(x, w_qkv, b_qkv, w_out, b_out, num_heads=NUM_HEADS)
    out = jax.block_until_ready(out)

    ref = r3d_attention_ref(x, w_qkv, b_qkv, w_out, b_out, num_heads=NUM_HEADS)
    assert out.shape == (BV, P, HIDDEN)
    # Tolerance covers the EUP approximate reciprocal used for the deferred softmax
    # normalization (pl.reciprocal approx=True; denominator >= 1 after max-subtract).
    assert jnp.allclose(out, ref, atol=2e-3, rtol=2e-3), "mismatch vs JAX reference"

    print("KERNEL_OK")
</pallas_src>

<mosaic_0001>
module attributes {stable_mosaic.version = 11 : i64} {
  func.func @r3d_attention_kernel(%arg0: i32, %arg1: memref<1x8x32xf32, #tpu.memory_space<vmem>>, %arg2: memref<32x96xf32, #tpu.memory_space<vmem>>, %arg3: memref<1x96xf32, #tpu.memory_space<vmem>>, %arg4: memref<4x8x32xf32, #tpu.memory_space<vmem>>, %arg5: memref<1x32xf32, #tpu.memory_space<vmem>>, %arg6: memref<1x8x32xf32, #tpu.memory_space<vmem>>) attributes {dimension_semantics = [#tpu.dimension_semantics<parallel>], iteration_bounds = array<i64: 2>, scalar_prefetch = 0 : i64, scratch_operands = 0 : i64, tpu.core_type = #tpu.core_type<tc>, window_params = [{transform_indices = @transform_0, window_bounds = array<i64: 1, 8, 32>}, {pipeline_mode = #tpu.pipeline_mode<synchronous>, transform_indices = @transform_1, window_bounds = array<i64: 32, 96>}, {pipeline_mode = #tpu.pipeline_mode<synchronous>, transform_indices = @transform_2, window_bounds = array<i64: 1, 96>}, {pipeline_mode = #tpu.pipeline_mode<synchronous>, transform_indices = @transform_3, window_bounds = array<i64: 4, 8, 32>}, {pipeline_mode = #tpu.pipeline_mode<synchronous>, transform_indices = @transform_4, window_bounds = array<i64: 1, 32>}, {transform_indices = @transform_5, window_bounds = array<i64: 1, 8, 32>}]} {
    %c0 = arith.constant 0 : index
    %c0_0 = arith.constant 0 : index
    %c0_1 = arith.constant 0 : index
    %0 = vector.load %arg1[%c0, %c0_0, %c0_1] : memref<1x8x32xf32, #tpu.memory_space<vmem>>, vector<1x8x32xf32>
    %1 = vector.shape_cast %0 : vector<1x8x32xf32> to vector<8x32xf32>
    %c0_2 = arith.constant 0 : index
    %c0_3 = arith.constant 0 : index
    %2 = vector.load %arg2[%c0_2, %c0_3] : memref<32x96xf32, #tpu.memory_space<vmem>>, vector<32x96xf32>
    %cst = arith.constant dense<0.000000e+00> : vector<8x96xf32>
    %3 = tpu.matmul %1, %2, %cst {dimension_numbers = #tpu.dot_dimension_numbers<[1], [0], [0], [1], [0, 0, 1, 1], [], []>} : vector<8x32xf32>, vector<32x96xf32>, vector<8x96xf32> -> vector<8x96xf32>
    %c0_4 = arith.constant 0 : index
    %c0_5 = arith.constant 0 : index
    %4 = vector.load %arg3[%c0_4, %c0_5] : memref<1x96xf32, #tpu.memory_space<vmem>>, vector<1x96xf32>
    %5 = vector.broadcast %4 : vector<1x96xf32> to vector<8x96xf32>
    %6 = arith.addf %3, %5 : vector<8x96xf32>
    %cst_6 = arith.constant 0.000000e+00 : f32
    %7 = vector.broadcast %cst_6 : f32 to vector<8x32xf32>
    %8 = vector.extract_strided_slice %6 {offsets = [0, 0], sizes = [8, 8], strides = [1, 1]} : vector<8x96xf32> to vector<8x8xf32>
    %cst_7 = arith.constant 0.353553385 : f32
    %9 = vector.broadcast %cst_7 : f32 to vector<8x8xf32>
    %10 = arith.mulf %8, %9 : vector<8x8xf32>
    %11 = vector.shape_cast %10 : vector<8x8xf32> to vector<1x8x8xf32>
    %12 = vector.extract_strided_slice %6 {offsets = [0, 32], sizes = [8, 8], strides = [1, 1]} : vector<8x96xf32> to vector<8x8xf32>
    %13 = vector.shape_cast %12 : vector<8x8xf32> to vector<1x8x8xf32>
    %14 = vector.extract_strided_slice %6 {offsets = [0, 64], sizes = [8, 8], strides = [1, 1]} : vector<8x96xf32> to vector<8x8xf32>
    %15 = vector.shape_cast %14 : vector<8x8xf32> to vector<1x8x8xf32>
    %cst_8 = arith.constant 0xFF800000 : f32
    %16 = vector.broadcast %cst_8 : f32 to vector<1x8x1xf32>
    %cst_9 = arith.constant 0.000000e+00 : f32
    %17 = vector.broadcast %cst_9 : f32 to vector<1x8x1xf32>
    %cst_10 = arith.constant 0.000000e+00 : f32
    %18 = vector.broadcast %cst_10 : f32 to vector<1x8x8xf32>
    "tpu.trace_start"() <{level = 10 : i32, message = "bqd,bkd->bqk"}> : () -> ()
    %cst_11 = arith.constant dense<0.000000e+00> : vector<1x8x8xf32>
    %19 = tpu.matmul %11, %13, %cst_11 {dimension_numbers = #tpu.dot_dimension_numbers<[2], [2], [1], [1], [0, 0, 0, 1, 1, 1], [0], [0]>} : vector<1x8x8xf32>, vector<1x8x8xf32>, vector<1x8x8xf32> -> vector<1x8x8xf32>
    "tpu.trace_stop"() : () -> ()
    %cst_12 = arith.constant dense<0xFF800000> : vector<1x8xf32>
    %20 = vector.multi_reduction <maximumf>, %19, %cst_12 [2] : vector<1x8x8xf32> to vector<1x8xf32>
    %21 = vector.shape_cast %20 : vector<1x8xf32> to vector<1x8x1xf32>
    %22 = arith.maximumf %16, %21 : vector<1x8x1xf32>
    %23 = arith.subf %16, %22 : vector<1x8x1xf32>
    %24 = math.exp %23 : vector<1x8x1xf32>
    %25 = vector.broadcast %22 : vector<1x8x1xf32> to vector<1x8x8xf32>
    %26 = arith.subf %19, %25 : vector<1x8x8xf32>
    %27 = math.exp %26 : vector<1x8x8xf32>
    %28 = arith.mulf %24, %17 : vector<1x8x1xf32>
    %cst_13 = arith.constant dense<0.000000e+00> : vector<1x8xf32>
    %29 = vector.multi_reduction <add>, %27, %cst_13 [2] : vector<1x8x8xf32> to vector<1x8xf32>
    %30 = vector.shape_cast %29 : vector<1x8xf32> to vector<1x8x1xf32>
    %31 = arith.addf %28, %30 : vector<1x8x1xf32>
    %32 = vector.broadcast %24 : vector<1x8x1xf32> to vector<1x8x8xf32>
    %33 = arith.mulf %32, %18 : vector<1x8x8xf32>
    "tpu.trace_start"() <{level = 10 : i32, message = "bqk,bkd->bqd"}> : () -> ()
    %cst_14 = arith.constant dense<0.000000e+00> : vector<1x8x8xf32>
    %34 = tpu.matmul %27, %15, %cst_14 {dimension_numbers = #tpu.dot_dimension_numbers<[2], [1], [1], [2], [0, 0, 0, 1, 1, 2], [0], [0]>} : vector<1x8x8xf32>, vector<1x8x8xf32>, vector<1x8x8xf32> -> vector<1x8x8xf32>
    "tpu.trace_stop"() : () -> ()
    %35 = arith.addf %33, %34 : vector<1x8x8xf32>
    %36 = tpu.reciprocal %31 {approx = true} : vector<1x8x1xf32> -> vector<1x8x1xf32>
    %37 = vector.broadcast %36 : vector<1x8x1xf32> to vector<1x8x8xf32>
    %38 = arith.mulf %35, %37 : vector<1x8x8xf32>
    %39 = vector.shape_cast %38 : vector<1x8x8xf32> to vector<8x8xf32>
    %c0_15 = arith.constant 0 : index
    %c0_16 = arith.constant 0 : index
    %c0_17 = arith.constant 0 : index
    %40 = vector.load %arg4[%c0_15, %c0_16, %c0_17] : memref<4x8x32xf32, #tpu.memory_space<vmem>>, vector<1x8x32xf32>
    %41 = vector.shape_cast %40 : vector<1x8x32xf32> to vector<8x32xf32>
    %cst_18 = arith.constant dense<0.000000e+00> : vector<8x32xf32>
    %42 = tpu.matmul %39, %41, %cst_18 {dimension_numbers = #tpu.dot_dimension_numbers<[1], [0], [0], [1], [0, 0, 1, 1], [], []>} : vector<8x8xf32>, vector<8x32xf32>, vector<8x32xf32> -> vector<8x32xf32>
    %43 = arith.addf %7, %42 : vector<8x32xf32>
    %44 = vector.extract_strided_slice %6 {offsets = [0, 8], sizes = [8, 8], strides = [1, 1]} : vector<8x96xf32> to vector<8x8xf32>
    %cst_19 = arith.constant 0.353553385 : f32
    %45 = vector.broadcast %cst_19 : f32 to vector<8x8xf32>
    %46 = arith.mulf %44, %45 : vector<8x8xf32>
    %47 = vector.shape_cast %46 : vector<8x8xf32> to vector<1x8x8xf32>
    %48 = vector.extract_strided_slice %6 {offsets = [0, 40], sizes = [8, 8], strides = [1, 1]} : vector<8x96xf32> to vector<8x8xf32>
    %49 = vector.shape_cast %48 : vector<8x8xf32> to vector<1x8x8xf32>
    %50 = vector.extract_strided_slice %6 {offsets = [0, 72], sizes = [8, 8], strides = [1, 1]} : vector<8x96xf32> to vector<8x8xf32>
    %51 = vector.shape_cast %50 : vector<8x8xf32> to vector<1x8x8xf32>
    %cst_20 = arith.constant 0xFF800000 : f32
    %52 = vector.broadcast %cst_20 : f32 to vector<1x8x1xf32>
    %cst_21 = arith.constant 0.000000e+00 : f32
    %53 = vector.broadcast %cst_21 : f32 to vector<1x8x1xf32>
    %cst_22 = arith.constant 0.000000e+00 : f32
    %54 = vector.broadcast %cst_22 : f32 to vector<1x8x8xf32>
    "tpu.trace_start"() <{level = 10 : i32, message = "bqd,bkd->bqk"}> : () -> ()
    %cst_23 = arith.constant dense<0.000000e+00> : vector<1x8x8xf32>
    %55 = tpu.matmul %47, %49, %cst_23 {dimension_numbers = #tpu.dot_dimension_numbers<[2], [2], [1], [1], [0, 0, 0, 1, 1, 1], [0], [0]>} : vector<1x8x8xf32>, vector<1x8x8xf32>, vector<1x8x8xf32> -> vector<1x8x8xf32>
    "tpu.trace_stop"() : () -> ()
    %cst_24 = arith.constant dense<0xFF800000> : vector<1x8xf32>
    %56 = vector.multi_reduction <maximumf>, %55, %cst_24 [2] : vector<1x8x8xf32> to vector<1x8xf32>
    %57 = vector.shape_cast %56 : vector<1x8xf32> to vector<1x8x1xf32>
    %58 = arith.maximumf %52, %57 : vector<1x8x1xf32>
    %59 = arith.subf %52, %58 : vector<1x8x1xf32>
    %60 = math.exp %59 : vector<1x8x1xf32>
    %61 = vector.broadcast %58 : vector<1x8x1xf32> to vector<1x8x8xf32>
    %62 = arith.subf %55, %61 : vector<1x8x8xf32>
    %63 = math.exp %62 : vector<1x8x8xf32>
    %64 = arith.mulf %60, %53 : vector<1x8x1xf32>
    %cst_25 = arith.constant dense<0.000000e+00> : vector<1x8xf32>
    %65 = vector.multi_reduction <add>, %63, %cst_25 [2] : vector<1x8x8xf32> to vector<1x8xf32>
    %66 = vector.shape_cast %65 : vector<1x8xf32> to vector<1x8x1xf32>
    %67 = arith.addf %64, %66 : vector<1x8x1xf32>
    %68 = vector.broadcast %60 : vector<1x8x1xf32> to vector<1x8x8xf32>
    %69 = arith.mulf %68, %54 : vector<1x8x8xf32>
    "tpu.trace_start"() <{level = 10 : i32, message = "bqk,bkd->bqd"}> : () -> ()
    %cst_26 = arith.constant dense<0.000000e+00> : vector<1x8x8xf32>
    %70 = tpu.matmul %63, %51, %cst_26 {dimension_numbers = #tpu.dot_dimension_numbers<[2], [1], [1], [2], [0, 0, 0, 1, 1, 2], [0], [0]>} : vector<1x8x8xf32>, vector<1x8x8xf32>, vector<1x8x8xf32> -> vector<1x8x8xf32>
    "tpu.trace_stop"() : () -> ()
    %71 = arith.addf %69, %70 : vector<1x8x8xf32>
    %72 = tpu.reciprocal %67 {approx = true} : vector<1x8x1xf32> -> vector<1x8x1xf32>
    %73 = vector.broadcast %72 : vector<1x8x1xf32> to vector<1x8x8xf32>
    %74 = arith.mulf %71, %73 : vector<1x8x8xf32>
    %75 = vector.shape_cast %74 : vector<1x8x8xf32> to vector<8x8xf32>
    %c1 = arith.constant 1 : index
    %c0_27 = arith.constant 0 : index
    %c0_28 = arith.constant 0 : index
    %76 = vector.load %arg4[%c1, %c0_27, %c0_28] : memref<4x8x32xf32, #tpu.memory_space<vmem>>, vector<1x8x32xf32>
    %77 = vector.shape_cast %76 : vector<1x8x32xf32> to vector<8x32xf32>
    %cst_29 = arith.constant dense<0.000000e+00> : vector<8x32xf32>
    %78 = tpu.matmul %75, %77, %cst_29 {dimension_numbers = #tpu.dot_dimension_numbers<[1], [0], [0], [1], [0, 0, 1, 1], [], []>} : vector<8x8xf32>, vector<8x32xf32>, vector<8x32xf32> -> vector<8x32xf32>
    %79 = arith.addf %43, %78 : vector<8x32xf32>
    %80 = vector.extract_strided_slice %6 {offsets = [0, 16], sizes = [8, 8], strides = [1, 1]} : vector<8x96xf32> to vector<8x8xf32>
    %cst_30 = arith.constant 0.353553385 : f32
    %81 = vector.broadcast %cst_30 : f32 to vector<8x8xf32>
    %82 = arith.mulf %80, %81 : vector<8x8xf32>
    %83 = vector.shape_cast %82 : vector<8x8xf32> to vector<1x8x8xf32>
    %84 = vector.extract_strided_slice %6 {offsets = [0, 48], sizes = [8, 8], strides = [1, 1]} : vector<8x96xf32> to vector<8x8xf32>
    %85 = vector.shape_cast %84 : vector<8x8xf32> to vector<1x8x8xf32>
    %86 = vector.extract_strided_slice %6 {offsets = [0, 80], sizes = [8, 8], strides = [1, 1]} : vector<8x96xf32> to vector<8x8xf32>
    %87 = vector.shape_cast %86 : vector<8x8xf32> to vector<1x8x8xf32>
    %cst_31 = arith.constant 0xFF800000 : f32
    %88 = vector.broadcast %cst_31 : f32 to vector<1x8x1xf32>
    %cst_32 = arith.constant 0.000000e+00 : f32
    %89 = vector.broadcast %cst_32 : f32 to vector<1x8x1xf32>
    %cst_33 = arith.constant 0.000000e+00 : f32
    %90 = vector.broadcast %cst_33 : f32 to vector<1x8x8xf32>
    "tpu.trace_start"() <{level = 10 : i32, message = "bqd,bkd->bqk"}> : () -> ()
    %cst_34 = arith.constant dense<0.000000e+00> : vector<1x8x8xf32>
    %91 = tpu.matmul %83, %85, %cst_34 {dimension_numbers = #tpu.dot_dimension_numbers<[2], [2], [1], [1], [0, 0, 0, 1, 1, 1], [0], [0]>} : vector<1x8x8xf32>, vector<1x8x8xf32>, vector<1x8x8xf32> -> vector<1x8x8xf32>
    "tpu.trace_stop"() : () -> ()
    %cst_35 = arith.constant dense<0xFF800000> : vector<1x8xf32>
    %92 = vector.multi_reduction <maximumf>, %91, %cst_35 [2] : vector<1x8x8xf32> to vector<1x8xf32>
    %93 = vector.shape_cast %92 : vector<1x8xf32> to vector<1x8x1xf32>
    %94 = arith.maximumf %88, %93 : vector<1x8x1xf32>
    %95 = arith.subf %88, %94 : vector<1x8x1xf32>
    %96 = math.exp %95 : vector<1x8x1xf32>
    %97 = vector.broadcast %94 : vector<1x8x1xf32> to vector<1x8x8xf32>
    %98 = arith.subf %91, %97 : vector<1x8x8xf32>
    %99 = math.exp %98 : vector<1x8x8xf32>
    %100 = arith.mulf %96, %89 : vector<1x8x1xf32>
    %cst_36 = arith.constant dense<0.000000e+00> : vector<1x8xf32>
    %101 = vector.multi_reduction <add>, %99, %cst_36 [2] : vector<1x8x8xf32> to vector<1x8xf32>
    %102 = vector.shape_cast %101 : vector<1x8xf32> to vector<1x8x1xf32>
    %103 = arith.addf %100, %102 : vector<1x8x1xf32>
    %104 = vector.broadcast %96 : vector<1x8x1xf32> to vector<1x8x8xf32>
    %105 = arith.mulf %104, %90 : vector<1x8x8xf32>
    "tpu.trace_start"() <{level = 10 : i32, message = "bqk,bkd->bqd"}> : () -> ()
    %cst_37 = arith.constant dense<0.000000e+00> : vector<1x8x8xf32>
    %106 = tpu.matmul %99, %87, %cst_37 {dimension_numbers = #tpu.dot_dimension_numbers<[2], [1], [1], [2], [0, 0, 0, 1, 1, 2], [0], [0]>} : vector<1x8x8xf32>, vector<1x8x8xf32>, vector<1x8x8xf32> -> vector<1x8x8xf32>
    "tpu.trace_stop"() : () -> ()
    %107 = arith.addf %105, %106 : vector<1x8x8xf32>
    %108 = tpu.reciprocal %103 {approx = true} : vector<1x8x1xf32> -> vector<1x8x1xf32>
    %109 = vector.broadcast %108 : vector<1x8x1xf32> to vector<1x8x8xf32>
    %110 = arith.mulf %107, %109 : vector<1x8x8xf32>
    %111 = vector.shape_cast %110 : vector<1x8x8xf32> to vector<8x8xf32>
    %c2 = arith.constant 2 : index
    %c0_38 = arith.constant 0 : index
    %c0_39 = arith.constant 0 : index
    %112 = vector.load %arg4[%c2, %c0_38, %c0_39] : memref<4x8x32xf32, #tpu.memory_space<vmem>>, vector<1x8x32xf32>
    %113 = vector.shape_cast %112 : vector<1x8x32xf32> to vector<8x32xf32>
    %cst_40 = arith.constant dense<0.000000e+00> : vector<8x32xf32>
    %114 = tpu.matmul %111, %113, %cst_40 {dimension_numbers = #tpu.dot_dimension_numbers<[1], [0], [0], [1], [0, 0, 1, 1], [], []>} : vector<8x8xf32>, vector<8x32xf32>, vector<8x32xf32> -> vector<8x32xf32>
    %115 = arith.addf %79, %114 : vector<8x32xf32>
    %116 = vector.extract_strided_slice %6 {offsets = [0, 24], sizes = [8, 8], strides = [1, 1]} : vector<8x96xf32> to vector<8x8xf32>
    %cst_41 = arith.constant 0.353553385 : f32
    %117 = vector.broadcast %cst_41 : f32 to vector<8x8xf32>
    %118 = arith.mulf %116, %117 : vector<8x8xf32>
    %119 = vector.shape_cast %118 : vector<8x8xf32> to vector<1x8x8xf32>
    %120 = vector.extract_strided_slice %6 {offsets = [0, 56], sizes = [8, 8], strides = [1, 1]} : vector<8x96xf32> to vector<8x8xf32>
    %121 = vector.shape_cast %120 : vector<8x8xf32> to vector<1x8x8xf32>
    %122 = vector.extract_strided_slice %6 {offsets = [0, 88], sizes = [8, 8], strides = [1, 1]} : vector<8x96xf32> to vector<8x8xf32>
    %123 = vector.shape_cast %122 : vector<8x8xf32> to vector<1x8x8xf32>
    %cst_42 = arith.constant 0xFF800000 : f32
    %124 = vector.broadcast %cst_42 : f32 to vector<1x8x1xf32>
    %cst_43 = arith.constant 0.000000e+00 : f32
    %125 = vector.broadcast %cst_43 : f32 to vector<1x8x1xf32>
    %cst_44 = arith.constant 0.000000e+00 : f32
    %126 = vector.broadcast %cst_44 : f32 to vector<1x8x8xf32>
    "tpu.trace_start"() <{level = 10 : i32, message = "bqd,bkd->bqk"}> : () -> ()
    %cst_45 = arith.constant dense<0.000000e+00> : vector<1x8x8xf32>
    %127 = tpu.matmul %119, %121, %cst_45 {dimension_numbers = #tpu.dot_dimension_numbers<[2], [2], [1], [1], [0, 0, 0, 1, 1, 1], [0], [0]>} : vector<1x8x8xf32>, vector<1x8x8xf32>, vector<1x8x8xf32> -> vector<1x8x8xf32>
    "tpu.trace_stop"() : () -> ()
    %cst_46 = arith.constant dense<0xFF800000> : vector<1x8xf32>
    %128 = vector.multi_reduction <maximumf>, %127, %cst_46 [2] : vector<1x8x8xf32> to vector<1x8xf32>
    %129 = vector.shape_cast %128 : vector<1x8xf32> to vector<1x8x1xf32>
    %130 = arith.maximumf %124, %129 : vector<1x8x1xf32>
    %131 = arith.subf %124, %130 : vector<1x8x1xf32>
    %132 = math.exp %131 : vector<1x8x1xf32>
    %133 = vector.broadcast %130 : vector<1x8x1xf32> to vector<1x8x8xf32>
    %134 = arith.subf %127, %133 : vector<1x8x8xf32>
    %135 = math.exp %134 : vector<1x8x8xf32>
    %136 = arith.mulf %132, %125 : vector<1x8x1xf32>
    %cst_47 = arith.constant dense<0.000000e+00> : vector<1x8xf32>
    %137 = vector.multi_reduction <add>, %135, %cst_47 [2] : vector<1x8x8xf32> to vector<1x8xf32>
    %138 = vector.shape_cast %137 : vector<1x8xf32> to vector<1x8x1xf32>
    %139 = arith.addf %136, %138 : vector<1x8x1xf32>
    %140 = vector.broadcast %132 : vector<1x8x1xf32> to vector<1x8x8xf32>
    %141 = arith.mulf %140, %126 : vector<1x8x8xf32>
    "tpu.trace_start"() <{level = 10 : i32, message = "bqk,bkd->bqd"}> : () -> ()
    %cst_48 = arith.constant dense<0.000000e+00> : vector<1x8x8xf32>
    %142 = tpu.matmul %135, %123, %cst_48 {dimension_numbers = #tpu.dot_dimension_numbers<[2], [1], [1], [2], [0, 0, 0, 1, 1, 2], [0], [0]>} : vector<1x8x8xf32>, vector<1x8x8xf32>, vector<1x8x8xf32> -> vector<1x8x8xf32>
    "tpu.trace_stop"() : () -> ()
    %143 = arith.addf %141, %142 : vector<1x8x8xf32>
    %144 = tpu.reciprocal %139 {approx = true} : vector<1x8x1xf32> -> vector<1x8x1xf32>
    %145 = vector.broadcast %144 : vector<1x8x1xf32> to vector<1x8x8xf32>
    %146 = arith.mulf %143, %145 : vector<1x8x8xf32>
    %147 = vector.shape_cast %146 : vector<1x8x8xf32> to vector<8x8xf32>
    %c3 = arith.constant 3 : index
    %c0_49 = arith.constant 0 : index
    %c0_50 = arith.constant 0 : index
    %148 = vector.load %arg4[%c3, %c0_49, %c0_50] : memref<4x8x32xf32, #tpu.memory_space<vmem>>, vector<1x8x32xf32>
    %149 = vector.shape_cast %148 : vector<1x8x32xf32> to vector<8x32xf32>
    %cst_51 = arith.constant dense<0.000000e+00> : vector<8x32xf32>
    %150 = tpu.matmul %147, %149, %cst_51 {dimension_numbers = #tpu.dot_dimension_numbers<[1], [0], [0], [1], [0, 0, 1, 1], [], []>} : vector<8x8xf32>, vector<8x32xf32>, vector<8x32xf32> -> vector<8x32xf32>
    %151 = arith.addf %115, %150 : vector<8x32xf32>
    %c0_52 = arith.constant 0 : index
    %c0_53 = arith.constant 0 : index
    %152 = vector.load %arg5[%c0_52, %c0_53] : memref<1x32xf32, #tpu.memory_space<vmem>>, vector<1x32xf32>
    %153 = vector.broadcast %152 : vector<1x32xf32> to vector<8x32xf32>
    %154 = arith.addf %151, %153 : vector<8x32xf32>
    %155 = vector.shape_cast %154 : vector<8x32xf32> to vector<1x8x32xf32>
    %c0_54 = arith.constant 0 : index
    %c0_55 = arith.constant 0 : index
    %c0_56 = arith.constant 0 : index
    %156 = vector.load %arg6[%c0_54, %c0_55, %c0_56] : memref<1x8x32xf32, #tpu.memory_space<vmem>>, vector<1x8x32xf32>
    tpu.vector_store %arg6[%c0_54, %c0_55, %c0_56], %155 {strides = array<i32>} : memref<1x8x32xf32, #tpu.memory_space<vmem>>, vector<1x8x32xf32>,
    return
  }
  func.func @transform_0(%arg0: i32) -> (i32, i32, i32) {
    %c0_i32 = arith.constant 0 : i32
    %c0_i32_0 = arith.constant 0 : i32
    %c0_i32_1 = arith.constant 0 : i32
    return %arg0, %c0_i32, %c0_i32_0 : i32, i32, i32
  }
  func.func @transform_1(%arg0: i32) -> (i32, i32) {
    %c0_i32 = arith.constant 0 : i32
    %c0_i32_0 = arith.constant 0 : i32
    %c0_i32_1 = arith.constant 0 : i32
    return %c0_i32, %c0_i32_0 : i32, i32
  }
  func.func @transform_2(%arg0: i32) -> (i32, i32) {
    %c0_i32 = arith.constant 0 : i32
    %c0_i32_0 = arith.constant 0 : i32
    %c0_i32_1 = arith.constant 0 : i32
    return %c0_i32, %c0_i32_0 : i32, i32
  }
  func.func @transform_3(%arg0: i32) -> (i32, i32, i32) {
    %c0_i32 = arith.constant 0 : i32
    %c0_i32_0 = arith.constant 0 : i32
    %c0_i32_1 = arith.constant 0 : i32
    %c0_i32_2 = arith.constant 0 : i32
    return %c0_i32, %c0_i32_0, %c0_i32_1 : i32, i32, i32
  }
  func.func @transform_4(%arg0: i32) -> (i32, i32) {
    %c0_i32 = arith.constant 0 : i32
    %c0_i32_0 = arith.constant 0 : i32
    %c0_i32_1 = arith.constant 0 : i32
    return %c0_i32, %c0_i32_0 : i32, i32
  }
  func.func @transform_5(%arg0: i32) -> (i32, i32, i32) {
    %c0_i32 = arith.constant 0 : i32
    %c0_i32_0 = arith.constant 0 : i32
    %c0_i32_1 = arith.constant 0 : i32
    return %arg0, %c0_i32, %c0_i32_0 : i32, i32, i32
  }
}

</mosaic_0001>

<llo_original>
// kernel: tpu_custom_call.1
$region0: #{tpu_custom_call.1}
  #allocation0 [shape = 'u32[]', space=smem, size = 0x4, offset = 0x4, fixed_abs, tag = 'smem constant byte address 0x4 - core index']
  #allocation1 [shape = 'u32[144,128]{1,0:T(1,128)}', space=vmem, size = 0x12000, scoped, tag = 'internal scratch']
  %s0 = inlined_call_operand.hbm [shape: f32[2,8,32], index: 0, kind: input, shape index: {}]
  %s1 = inlined_call_operand.hbm [shape: f32[32,96], index: 1, kind: input, shape index: {}]
  %s2 = inlined_call_operand.vmem [shape: f32[1,96], index: 2, kind: input, shape index: {}]
  %s3 = inlined_call_operand.hbm [shape: f32[4,8,32], index: 3, kind: input, shape index: {}]
  %s4 = inlined_call_operand.vmem [shape: f32[1,32], index: 4, kind: input, shape index: {}]
  %s5 = inlined_call_operand.hbm [shape: f32[2,8,32], index: 5, kind: output, shape index: {}]
  %s6 = sld [smem:[#allocation0]]
  $region65: #{tpu_custom_call.1} parent=0
    _
  %s8 = ssub.s32 1, %s6
  %s9 = scalar_select 0, %s8, %s6
  $region1: #{tpu_custom_call.1} parent=0
    #allocation2 [shape = 'u8[8192]{0}', space=vmem, size = 0x2000, scoped, tag = 'input window, operand 0']
    #allocation3 [shape = 's32[2]{0}', space=sflag, size = 0x8, scoped, tag = 'scoped memory for tpu_custom_call.1']
    #allocation4 [shape = 's32[2]{0}', space=sflag, size = 0x8, scoped, tag = 'scoped memory for tpu_custom_call.1']
    #allocation5 [shape = 'u8[16384]{0}', space=vmem, size = 0x4000, scoped, tag = 'input window, operand 1, single buffered']
    #allocation6 [shape = 's32[1]{0}', space=sflag, size = 0x4, scoped, tag = 'scoped memory for tpu_custom_call.1']
    #allocation7 [shape = 'u8[16384]{0}', space=vmem, size = 0x4000, scoped, tag = 'input window, operand 3, single buffered']
    #allocation8 [shape = 'u8[8192]{0}', space=vmem, size = 0x2000, scoped, tag = 'output window, operand 0']
    %10 = vsyncpa [#allocation3], 0
    %s11 = scalar_lea.sflag [#allocation3], 1
    %12 = vsyncpa %s11, 0
    %13 = vsyncpa [#allocation6], 0
    %14 = vsyncpa [#allocation4], 0
    %s15 = scalar_lea.sflag [#allocation4], 1
    %16 = vsyncpa %s15, 0
    loop: start=0, step=1, limit=4
    $region2: #{tpu_custom_call.1} parent=1 // loop_pre_header
      _
    $region3: #{tpu_custom_call.1} parent=1 // loop_header
      %s18 = sphi 0, %s22
      %p19 = scmp.ge.s32.totalorder %s18, 4
      %s28 = sphi 0, %s30
      %s31 = sphi 0, %s28
      %s32 = sphi 0, %s31
      %s48 = sphi 0, %s32
      %s52 = sphi 0, %s52
      %s54 = sphi 0, %s52
      %s55 = sphi 0, %s54
      %s69 = sphi 0, %s55
      %s73 = sphi 0, %s73
      %s75 = sphi 0, %s73
      %s76 = sphi 0, %s75
      %s90 = sphi 0, %s76
      %s94 = sphi 0, %s94
      %s96 = sphi 0, %s94
      %s97 = sphi 0, %s96
      %s111 = sphi 0, %s97
      %s115 = sphi 0, %s115
      %s117 = sphi 0, %s115
      %s118 = sphi 0, %s117
      %s132 = sphi 0, %s118
      %s138 = sphi 0, %s140
      %s141 = sphi 0, %s138
      %s142 = sphi 0, %s141
      %s158 = sphi 0, %s142
    $region4: #{tpu_custom_call.1} parent=1 // loop_header_branch
      %21 = sbr.rel (%p19) target = $region8
    $region5: #{tpu_custom_call.1} parent=1 // loop_body
      %s23 = ssub.s32 %s18, 1
      %s24 = ssub.s32 %s18, 2
      %s25 = sadd.s32 %s18, 1
      %s26 = ssub.s32 %s18, %s25
      %p27 = scmp.eq.s32.totalorder %s26, 0
      %s29 = sadd.s32 %s28, 1
      %s30 = scalar_select %p27, %s28, %s29
      %p33 = pneg %p27
      %p34 = scmp.eq.s32.totalorder %s18, 1
      %p35 = por %p33, %p34
      %p36 = scmp.ne.s32.totalorder %s28, %s31
      %p37 = scmp.eq.s32.totalorder %s18, 0
      %p38 = por %p36, %p37
      %p39 = scmp.ne.s32.totalorder %s28, %s31
      %p40 = scmp.eq.s32.totalorder %s23, 1
      %p41 = por %p39, %p40
      %p42 = scmp.ne.s32.totalorder %s31, %s32
      %p43 = scmp.eq.s32.totalorder %s23, 0
      %p44 = por %p42, %p43
      %p45 = scmp.ne.s32.totalorder %s31, %s32
      %p46 = scmp.eq.s32.totalorder %s24, 1
      %p47 = por %p45, %p46
      %p49 = scmp.ne.s32.totalorder %s32, %s48
      %p50 = scmp.eq.s32.totalorder %s24, 0
      %p51 = por %p49, %p50
      %s53 = sadd.s32 %s52, 1
      %p56 = scmp.eq.s32.totalorder %s18, 1
      %p57 = scmp.ne.s32.totalorder %s52, %s54
      %p58 = scmp.eq.s32.totalorder %s18, 0
      %p59 = por %p57, %p58
      %p60 = scmp.ne.s32.totalorder %s52, %s54
      %p61 = scmp.eq.s32.totalorder %s23, 1
      %p62 = por %p60, %p61
      %p63 = scmp.ne.s32.totalorder %s54, %s55
      %p64 = scmp.eq.s32.totalorder %s23, 0
      %p65 = por %p63, %p64
      %p66 = scmp.ne.s32.totalorder %s54, %s55
      %p67 = scmp.eq.s32.totalorder %s24, 1
      %p68 = por %p66, %p67
      %p70 = scmp.ne.s32.totalorder %s55, %s69
      %p71 = scmp.eq.s32.totalorder %s24, 0
      %p72 = por %p70, %p71
      %s74 = sadd.s32 %s73, 1
      %p77 = scmp.eq.s32.totalorder %s18, 1
      %p78 = scmp.ne.s32.totalorder %s73, %s75
      %p79 = scmp.eq.s32.totalorder %s18, 0
      %p80 = por %p78, %p79
      %p81 = scmp.ne.s32.totalorder %s73, %s75
      %p82 = scmp.eq.s32.totalorder %s23, 1
      %p83 = por %p81, %p82
      %p84 = scmp.ne.s32.totalorder %s75, %s76
      %p85 = scmp.eq.s32.totalorder %s23, 0
      %p86 = por %p84, %p85
      %p87 = scmp.ne.s32.totalorder %s75, %s76
      %p88 = scmp.eq.s32.totalorder %s24, 1
      %p89 = por %p87, %p88
      %p91 = scmp.ne.s32.totalorder %s76, %s90
      %p92 = scmp.eq.s32.totalorder %s24, 0
      %p93 = por %p91, %p92
      %s95 = sadd.s32 %s94, 1
      %p98 = scmp.eq.s32.totalorder %s18, 1
      %p99 = scmp.ne.s32.totalorder %s94, %s96
      %p100 = scmp.eq.s32.totalorder %s18, 0
      %p101 = por %p99, %p100
      %p102 = scmp.ne.s32.totalorder %s94, %s96
      %p103 = scmp.eq.s32.totalorder %s23, 1
      %p104 = por %p102, %p103
      %p105 = scmp.ne.s32.totalorder %s96, %s97
      %p106 = scmp.eq.s32.totalorder %s23, 0
      %p107 = por %p105, %p106
      %p108 = scmp.ne.s32.totalorder %s96, %s97
      %p109 = scmp.eq.s32.totalorder %s24, 1
      %p110 = por %p108, %p109
      %p112 = scmp.ne.s32.totalorder %s97, %s111
      %p113 = scmp.eq.s32.totalorder %s24, 0
      %p114 = por %p112, %p113
      %s116 = sadd.s32 %s115, 1
      %p119 = scmp.eq.s32.totalorder %s18, 1
      %p120 = scmp.ne.s32.totalorder %s115, %s117
      %p121 = scmp.eq.s32.totalorder %s18, 0
      %p122 = por %p120, %p121
      %p123 = scmp.ne.s32.totalorder %s115, %s117
      %p124 = scmp.eq.s32.totalorder %s23, 1
      %p125 = por %p123, %p124
      %p126 = scmp.ne.s32.totalorder %s117, %s118
      %p127 = scmp.eq.s32.totalorder %s23, 0
      %p128 = por %p126, %p127
      %p129 = scmp.ne.s32.totalorder %s117, %s118
      %p130 = scmp.eq.s32.totalorder %s24, 1
      %p131 = por %p129, %p130
      %p133 = scmp.ne.s32.totalorder %s118, %s132
      %p134 = scmp.eq.s32.totalorder %s24, 0
      %p135 = por %p133, %p134
      %s136 = ssub.s32 %s18, %s25
      %p137 = scmp.eq.s32.totalorder %s136, 0
      %s139 = sadd.s32 %s138, 1
      %s140 = scalar_select %p137, %s138, %s139
      %p143 = pneg %p137
      %p144 = scmp.eq.s32.totalorder %s18, 1
      %p145 = por %p143, %p144
      %p146 = scmp.ne.s32.totalorder %s138, %s141
      %p147 = scmp.eq.s32.totalorder %s18, 0
      %p148 = por %p146, %p147
      %p149 = scmp.ne.s32.totalorder %s138, %s141
      %p150 = scmp.eq.s32.totalorder %s23, 1
      %p151 = por %p149, %p150
      %p152 = scmp.ne.s32.totalorder %s141, %s142
      %p153 = scmp.eq.s32.totalorder %s23, 0
      %p154 = por %p152, %p153
      %p155 = scmp.ne.s32.totalorder %s141, %s142
      %p156 = scmp.eq.s32.totalorder %s24, 1
      %p157 = por %p155, %p156
      %p159 = scmp.ne.s32.totalorder %s142, %s158
      %p160 = scmp.eq.s32.totalorder %s24, 0
      %p161 = por %p159, %p160
      %p162 = scmp.le.s32.totalorder 1, %s18
      %p163 = scmp.lt.s32.totalorder %s18, 3
      %p164 = pnand %p162, %p163
      %p165 = pneg %p164
      // Predicated region
      $region9: #{tpu_custom_call.1} parent=5 // pred_check
        _
      $region10: #{tpu_custom_call.1} parent=5 // pred_check_branch
        %167 = sbr.rel (%p164) target = $region12
      $region11: #{tpu_custom_call.1} parent=5 // pred_region
        %s168 = ssub.s32 %s18, 1
        // Predicated region
        $region13: #{tpu_custom_call.1} parent=11 // pred_check
          %p169 = pneg %p65
        $region14: #{tpu_custom_call.1} parent=11 // pred_check_branch
          %171 = sbr.rel (%p169) target = $region16
        $region15: #{tpu_custom_call.1} parent=11 // pred_region
          %s173 = ssub.s32 512, 512
          %174 = vsyncadd [#allocation6], %s173
          %s175 = sshll.u32 [#allocation5], 4
          %s176 = int_to_ptr.vmem [resolvable:$true] %s175
          %181 = dma.hbm_to_vmem [thread:$0]  %s1, 512, %s176, [#allocation6], 128, 128, 8
        $region16: #{tpu_custom_call.1} parent=11 // pred_fallthru
          _
        // Predicated region
        $region17: #{tpu_custom_call.1} parent=11 // pred_check
          %p182 = pneg %p86
        $region18: #{tpu_custom_call.1} parent=11 // pred_check_branch
          %184 = sbr.rel (%p182) target = $region20
        $region19: #{tpu_custom_call.1} parent=11 // pred_region
          _
        $region20: #{tpu_custom_call.1} parent=11 // pred_fallthru
          _
        // Predicated region
        $region21: #{tpu_custom_call.1} parent=11 // pred_check
          %p185 = pneg %p107
        $region22: #{tpu_custom_call.1} parent=11 // pred_check_branch
          %187 = sbr.rel (%p185) target = $region24
        $region23: #{tpu_custom_call.1} parent=11 // pred_region
          %s189 = ssub.s32 512, 512
          %190 = vsyncadd [#allocation6], %s189
          %s191 = sshll.u32 [#allocation7], 4
          %s192 = int_to_ptr.vmem [resolvable:$true] %s191
          %197 = dma.hbm_to_vmem [thread:$0]  %s3, 512, %s192, [#allocation6], 128, 128, 8
        $region24: #{tpu_custom_call.1} parent=11 // pred_fallthru
          _
        // Predicated region
        $region25: #{tpu_custom_call.1} parent=11 // pred_check
          %p198 = pneg %p128
        $region26: #{tpu_custom_call.1} parent=11 // pred_check_branch
          %200 = sbr.rel (%p198) target = $region28
        $region27: #{tpu_custom_call.1} parent=11 // pred_region
          _
        $region28: #{tpu_custom_call.1} parent=11 // pred_fallthru
          _
      $region12: #{tpu_custom_call.1} parent=5 // pred_fallthru
        _
      %p201 = scmp.lt.s32.totalorder %s18, 2
      // Predicated region
      $region29: #{tpu_custom_call.1} parent=5 // pred_check
        %p202 = pneg %p201
      $region30: #{tpu_custom_call.1} parent=5 // pred_check_branch
        %204 = sbr.rel (%p202) target = $region32
      $region31: #{tpu_custom_call.1} parent=5 // pred_region
        // Predicated region
        $region33: #{tpu_custom_call.1} parent=31 // pred_check
          %p205 = pneg %p38
        $region34: #{tpu_custom_call.1} parent=31 // pred_check_branch
          %207 = sbr.rel (%p205) target = $region36
        $region35: #{tpu_custom_call.1} parent=31 // pred_region
          %s208 = sand.u32 %s28, 1
          %s209 = scalar_lea.sflag [#allocation3], %s208
          %s210 = sand.u32 %s28, 1
          %s211 = smul.addr %s210, 8
          %s212 = scalar_lea.vmem [#allocation2], %s211
          %s214 = ssub.s32 128, 128
          %215 = vsyncadd %s209, %s214
          %s216 = smul.addr %s18, 128
          %s217 = scalar_lea.hbm %s0, %s216
          %s219 = sshll.u32 %s212, 4
          %s220 = int_to_ptr.vmem [resolvable:$true] %s219
          %222 = dma.hbm_to_vmem [thread:$0]  %s217, 128, %s220, %s209
        $region36: #{tpu_custom_call.1} parent=31 // pred_fallthru
          _
      $region32: #{tpu_custom_call.1} parent=5 // pred_fallthru
        _
      %p223 = scmp.le.s32.totalorder 1, %s18
      %p224 = scmp.lt.s32.totalorder %s18, 3
      %p225 = pnand %p223, %p224
      %p226 = pneg %p225
      // Predicated region
      $region37: #{tpu_custom_call.1} parent=5 // pred_check
        _
      $region38: #{tpu_custom_call.1} parent=5 // pred_check_branch
        %228 = sbr.rel (%p225) target = $region40
      $region39: #{tpu_custom_call.1} parent=5 // pred_region
        %s229 = ssub.s32 %s18, 1
        %s230 = sand.u32 %s31, 1
        %s231 = scalar_lea.sflag [#allocation3], %s230
        %s232 = sand.u32 %s31, 1
        %s233 = smul.addr %s232, 8
        %s234 = scalar_lea.vmem [#allocation2], %s233
        // Predicated region
        $region41: #{tpu_custom_call.1} parent=39 // pred_check
          %p235 = pneg %p44
        $region42: #{tpu_custom_call.1} parent=39 // pred_check_branch
          %237 = sbr.rel (%p235) target = $region44
        $region43: #{tpu_custom_call.1} parent=39 // pred_region
          %238 = dma.done %s231, 128
        $region44: #{tpu_custom_call.1} parent=39 // pred_fallthru
          _
        // Predicated region
        $region45: #{tpu_custom_call.1} parent=39 // pred_check
          %p239 = pneg %p65
        $region46: #{tpu_custom_call.1} parent=39 // pred_check_branch
          %241 = sbr.rel (%p239) target = $region48
        $region47: #{tpu_custom_call.1} parent=39 // pred_region
          %242 = dma.done [#allocation6], 512
        $region48: #{tpu_custom_call.1} parent=39 // pred_fallthru
          _
        // Predicated region
        $region49: #{tpu_custom_call.1} parent=39 // pred_check
          %p243 = pneg %p107
        $region50: #{tpu_custom_call.1} parent=39 // pred_check_branch
          %245 = sbr.rel (%p243) target = $region52
        $region51: #{tpu_custom_call.1} parent=39 // pred_region
          %246 = dma.done [#allocation6], 512
        $region52: #{tpu_custom_call.1} parent=39 // pred_fallthru
          _
        %s247 = sand.u32 %s31, 1
        %s248 = scalar_lea.sflag [#allocation3], %s247
        %s249 = sand.u32 %s31, 1
        %s250 = smul.addr %s249, 8
        %s251 = scalar_lea.vmem [#allocation2], %s250
        %p252 = pneg %p44
        %p253 = pneg %p41
        %p254 = pneg %p65
        %p255 = pneg %p62
        %p256 = pneg %p86
        %p257 = pneg %p83
        %p258 = pneg %p107
        %p259 = pneg %p104
        %p260 = pneg %p128
        %p261 = pneg %p125
        %p262 = pneg %p154
        %p263 = pneg %p151
        %s264 = sand.u32 %s141, 1
        %s265 = scalar_lea.sflag [#allocation4], %s264
        %s266 = sand.u32 %s141, 1
        %s267 = smul.addr %s266, 8
        %s268 = scalar_lea.vmem [#allocation8], %s267
        %v269 = vld [vmem:[%s234] sm:$0xff]
        %v270 = vld [vmem:[#allocation5] sm:$0xff]
        %v271 = vld [vmem:[#allocation5 + $0x8] sm:$0xff]
        %v272 = vld [vmem:[#allocation5 + $0x10] sm:$0xff]
        %v273 = vld [vmem:[#allocation5 + $0x18] sm:$0xff]
        %v274 = vld [vmem:[%s2] sm:$0x1]
        %v276 = vlaneseq
        %v277 = vshrl.u32 %v276, 7
        %v278 = vsub.s32 0, %v277
        %v279 = vrot.slane %v274, %v278
        %vm281 = vcmask 261120
        %v283 = vsel %vm281, %v269, 0
        %285 = vmatprep.subr.mxu0 0.0
        %286 = vmatpush1.msra.mxu0 %v270
        %287 = vmatprep.subr.mxu0 0.0
        %288 = vmatpush1.msra.mxu0 %v271
        %289 = vmatprep.subr.mxu0 0.0
        %290 = vmatpush1.msra.mxu0 %v272
        %291 = vmatprep.subr.mxu0 0.0
        %292 = vmatpush1.msra.mxu0 %v273
        %293 = vmatprep.subr.mxu0 0.0
        %294 = vmatpush1.msra.mxu0 0.0
        %295 = vmatprep.subr.mxu0 0.0
        %296 = vmatpush1.msra.mxu0 0.0
        %297 = vmatprep.subr.mxu0 0.0
        %298 = vmatpush1.msra.mxu0 0.0
        %299 = vmatprep.subr.mxu0 0.0
        %300 = vmatpush1.msra.mxu0 0.0
        %301 = vmatprep.subr.mxu0 0.0
        %302 = vmatpush1.msra.mxu0 0.0
        %303 = vmatprep.subr.mxu0 0.0
        %304 = vmatpush1.msra.mxu0 0.0
        %305 = vmatprep.subr.mxu0 0.0
        %306 = vmatpush1.msra.mxu0 0.0
        %307 = vmatprep.subr.mxu0 0.0
        %308 = vmatpush1.msra.mxu0 0.0
        %309 = vmatprep.subr.mxu0 0.0
        %310 = vmatpush1.msra.mxu0 0.0
        %311 = vmatprep.subr.mxu0 0.0
        %312 = vmatpush1.msra.mxu0 0.0
        %313 = vmatprep.subr.mxu0 0.0
        %314 = vmatpush1.msra.mxu0 0.0
        %315 = vmatprep.subr.mxu0 0.0
        %316 = vmatpush1.msra.mxu0 0.0
        %317 = vmatprep.subr.mxu0 0.0
        %318 = vmatpush1.msra.mxu0 0.0
        %319 = vmatprep.subr.mxu0 0.0
        %320 = vmatpush1.msra.mxu0 0.0
        %321 = vmatprep.subr.mxu0 0.0
        %322 = vmatpush1.msra.mxu0 0.0
        %323 = vmatprep.subr.mxu0 0.0
        %324 = vmatpush1.msra.mxu0 0.0
        %325 = vmatprep.subr.mxu0 0.0
        %326 = vmatpush1.msra.mxu0 0.0
        %327 = vmatprep.subr.mxu0 0.0
        %328 = vmatpush1.msra.mxu0 0.0
        %329 = vmatprep.subr.mxu0 0.0
        %330 = vmatpush1.msra.mxu0 0.0
        %331 = vmatprep.subr.mxu0 0.0
        %332 = vmatpush1.msra.mxu0 0.0
        %333 = vmatprep.subr.mxu0 0.0
        %334 = vmatpush1.msra.mxu0 0.0
        %335 = vmatprep.subr.mxu0 0.0
        %336 = vmatpush1.msra.mxu0 0.0
        %337 = vmatprep.subr.mxu0 0.0
        %338 = vmatpush1.msra.mxu0 0.0
        %339 = vmatprep.subr.mxu0 0.0
        %340 = vmatpush1.msra.mxu0 0.0
        %341 = vmatprep.subr.mxu0 0.0
        %342 = vmatpush1.msra.mxu0 0.0
        %343 = vmatprep.subr.mxu0 0.0
        %344 = vmatpush1.msra.mxu0 0.0
        %345 = vmatprep.subr.mxu0 0.0
        %346 = vmatpush1.msra.mxu0 0.0
        %347 = vmatprep.subr.mxu0 0.0
        %348 = vmatpush1.msra.mxu0 0.0
        %349 = vmatprep.mubr.f32.mxu0 0.0
        %350 = vmatmul.mubr.f32.gmra.mrb[0].mxu0 %v283
        %v351 = vpop.f32.mrb[0].mxu0
        %v352 = vadd.f32 %v279, %v351
        %v353 = vpop.f32.mrb[0].mxu0
        %354 = vdwg.mxu0
        %v355 = vmul.f32 %v352, 0.35355338
        %357 = vrot.lane.b32.xlu0 %v352, 96
        %v358 = vpop.permute.xlu0 %357
        %vm359 = vcmask 64512
        %v361 = vsel %vm359, %v355, 0
        %v363 = vsel %vm359, %v358, 0
        %365 = vmatprep.subr.mxu0 0.0
        %366 = vmatpush1.xpose.msra.mxu0 %v363
        %367 = vmatprep.subr.mxu0 0.0
        %368 = vmatpush1.xpose.msra.mxu0 0.0
        %369 = vmatprep.subr.mxu0 0.0
        %370 = vmatpush1.xpose.msra.mxu0 0.0
        %371 = vmatprep.subr.mxu0 0.0
        %372 = vmatpush1.xpose.msra.mxu0 0.0
        %373 = vmatprep.subr.mxu0 0.0
        %374 = vmatpush1.xpose.msra.mxu0 0.0
        %375 = vmatprep.subr.mxu0 0.0
        %376 = vmatpush1.xpose.msra.mxu0 0.0
        %377 = vmatprep.subr.mxu0 0.0
        %378 = vmatpush1.xpose.msra.mxu0 0.0
        %379 = vmatprep.subr.mxu0 0.0
        %380 = vmatpush1.xpose.msra.mxu0 0.0
        %381 = vmatprep.subr.mxu0 0.0
        %382 = vmatpush1.xpose.msra.mxu0 0.0
        %383 = vmatprep.subr.mxu0 0.0
        %384 = vmatpush1.xpose.msra.mxu0 0.0
        %385 = vmatprep.subr.mxu0 0.0
        %386 = vmatpush1.xpose.msra.mxu0 0.0
        %387 = vmatprep.subr.mxu0 0.0
        %388 = vmatpush1.xpose.msra.mxu0 0.0
        %389 = vmatprep.subr.mxu0 0.0
        %390 = vmatpush1.xpose.msra.mxu0 0.0
        %391 = vmatprep.subr.mxu0 0.0
        %392 = vmatpush1.xpose.msra.mxu0 0.0
        %393 = vmatprep.subr.mxu0 0.0
        %394 = vmatpush1.xpose.msra.mxu0 0.0
        %395 = vmatprep.subr.mxu0 0.0
        %396 = vmatpush1.xpose.msra.mxu0 0.0
        %397 = vmatprep.subr.mxu0 0.0
        %398 = vmatpush1.xpose.msra.mxu0 0.0
        %399 = vmatprep.subr.mxu0 0.0
        %400 = vmatpush1.xpose.msra.mxu0 0.0
        %401 = vmatprep.subr.mxu0 0.0
        %402 = vmatpush1.xpose.msra.mxu0 0.0
        %403 = vmatprep.subr.mxu0 0.0
        %404 = vmatpush1.xpose.msra.mxu0 0.0
        %405 = vmatprep.subr.mxu0 0.0
        %406 = vmatpush1.xpose.msra.mxu0 0.0
        %407 = vmatprep.subr.mxu0 0.0
        %408 = vmatpush1.xpose.msra.mxu0 0.0
        %409 = vmatprep.subr.mxu0 0.0
        %410 = vmatpush1.xpose.msra.mxu0 0.0
        %411 = vmatprep.subr.mxu0 0.0
        %412 = vmatpush1.xpose.msra.mxu0 0.0
        %413 = vmatprep.subr.mxu0 0.0
        %414 = vmatpush1.xpose.msra.mxu0 0.0
        %415 = vmatprep.subr.mxu0 0.0
        %416 = vmatpush1.xpose.msra.mxu0 0.0
        %417 = vmatprep.subr.mxu0 0.0
        %418 = vmatpush1.xpose.msra.mxu0 0.0
        %419 = vmatprep.subr.mxu0 0.0
        %420 = vmatpush1.xpose.msra.mxu0 0.0
        %421 = vmatprep.subr.mxu0 0.0
        %422 = vmatpush1.xpose.msra.mxu0 0.0
        %423 = vmatprep.subr.mxu0 0.0
        %424 = vmatpush1.xpose.msra.mxu0 0.0
        %425 = vmatprep.subr.mxu0 0.0
        %426 = vmatpush1.xpose.msra.mxu0 0.0
        %427 = vmatprep.subr.mxu0 0.0
        %428 = vmatpush1.xpose.msra.mxu0 0.0
        %429 = vmatprep.mubr.f32.mxu0 0.0
        %430 = vmatmul.mubr.f32.gmra.mrb[0].mxu0 %v361
        %v431 = vpop.f32.mrb[0].mxu0
        %v432 = vadd.f32 0.0, %v431
        %v433 = vpop.f32.mrb[0].mxu0
        %434 = vdwg.mxu0
        %v435 = vsel %vm359, %v432, -inf
        %436 = vmax.xlane.f32.xlu0 %v435
        %v437 = vpop.xlane.xlu0 %436
        %v438 = vsub.f32 -inf, %v437
        %v439 = vmul.f32 %v438, 1.442695
        %v440 = vpow.pop %v439
        %v441 = vsub.f32 %v432, %v437
        %v442 = vmul.f32 %v441, 1.442695
        %v443 = vpow.pop %v442
        %v444 = vmul.f32 %v440, 0.0
        %v445 = vsel %vm359, %v443, 0.0
        %446 = vadd.xlane.f32.xlu0 %v445
        %v447 = vpop.xlane.xlu0 %446
        %v448 = vadd.f32 %v444, %v447
        %449 = vrot.lane.b32.xlu0 %v352, 64
        %v450 = vpop.permute.xlu0 %449
        %v453 = vsel %vm359, %v443, 0
        %455 = vmatprep.subr.mxu0 0.0
        %456 = vmatpush1.msra.mxu0 %v450
        %457 = vmatprep.subr.mxu0 0.0
        %458 = vmatpush1.msra.mxu0 0.0
        %459 = vmatprep.subr.mxu0 0.0
        %460 = vmatpush1.msra.mxu0 0.0
        %461 = vmatprep.subr.mxu0 0.0
        %462 = vmatpush1.msra.mxu0 0.0
        %463 = vmatprep.subr.mxu0 0.0
        %464 = vmatpush1.msra.mxu0 0.0
        %465 = vmatprep.subr.mxu0 0.0
        %466 = vmatpush1.msra.mxu0 0.0
        %467 = vmatprep.subr.mxu0 0.0
        %468 = vmatpush1.msra.mxu0 0.0
        %469 = vmatprep.subr.mxu0 0.0
        %470 = vmatpush1.msra.mxu0 0.0
        %471 = vmatprep.subr.mxu0 0.0
        %472 = vmatpush1.msra.mxu0 0.0
        %473 = vmatprep.subr.mxu0 0.0
        %474 = vmatpush1.msra.mxu0 0.0
        %475 = vmatprep.subr.mxu0 0.0
        %476 = vmatpush1.msra.mxu0 0.0
        %477 = vmatprep.subr.mxu0 0.0
        %478 = vmatpush1.msra.mxu0 0.0
        %479 = vmatprep.subr.mxu0 0.0
        %480 = vmatpush1.msra.mxu0 0.0
        %481 = vmatprep.subr.mxu0 0.0
        %482 = vmatpush1.msra.mxu0 0.0
        %483 = vmatprep.subr.mxu0 0.0
        %484 = vmatpush1.msra.mxu0 0.0
        %485 = vmatprep.subr.mxu0 0.0
        %486 = vmatpush1.msra.mxu0 0.0
        %487 = vmatprep.subr.mxu0 0.0
        %488 = vmatpush1.msra.mxu0 0.0
        %489 = vmatprep.subr.mxu0 0.0
        %490 = vmatpush1.msra.mxu0 0.0
        %491 = vmatprep.subr.mxu0 0.0
        %492 = vmatpush1.msra.mxu0 0.0
        %493 = vmatprep.subr.mxu0 0.0
        %494 = vmatpush1.msra.mxu0 0.0
        %495 = vmatprep.subr.mxu0 0.0
        %496 = vmatpush1.msra.mxu0 0.0
        %497 = vmatprep.subr.mxu0 0.0
        %498 = vmatpush1.msra.mxu0 0.0
        %499 = vmatprep.subr.mxu0 0.0
        %500 = vmatpush1.msra.mxu0 0.0
        %501 = vmatprep.subr.mxu0 0.0
        %502 = vmatpush1.msra.mxu0 0.0
        %503 = vmatprep.subr.mxu0 0.0
        %504 = vmatpush1.msra.mxu0 0.0
        %505 = vmatprep.subr.mxu0 0.0
        %506 = vmatpush1.msra.mxu0 0.0
        %507 = vmatprep.subr.mxu0 0.0
        %508 = vmatpush1.msra.mxu0 0.0
        %509 = vmatprep.subr.mxu0 0.0
        %510 = vmatpush1.msra.mxu0 0.0
        %511 = vmatprep.subr.mxu0 0.0
        %512 = vmatpush1.msra.mxu0 0.0
        %513 = vmatprep.subr.mxu0 0.0
        %514 = vmatpush1.msra.mxu0 0.0
        %515 = vmatprep.subr.mxu0 0.0
        %516 = vmatpush1.msra.mxu0 0.0
        %517 = vmatprep.subr.mxu0 0.0
        %518 = vmatpush1.msra.mxu0 0.0
        %519 = vmatprep.mubr.f32.mxu0 0.0
        %520 = vmatmul.mubr.f32.gmra.mrb[0].mxu0 %v453
        %v521 = vpop.f32.mrb[0].mxu0
        %v522 = vadd.f32 0.0, %v521
        %v523 = vpop.f32.mrb[0].mxu0
        %524 = vdwg.mxu0
        %v525 = vadd.f32 %v444, %v522
        %v526 = vrcp.pop %v448
        %v527 = vmul.f32 %v525, %v526
        %v528 = vld [vmem:[#allocation7] sm:$0xff]
        %529 = vrot.lane.b32.xlu0 %v355, 120
        %v530 = vpop.permute.xlu0 %529
        %531 = vrot.lane.b32.xlu0 %v352, 88
        %v532 = vpop.permute.xlu0 %531
        %v533 = vsel %vm359, %v530, 0
        %v535 = vsel %vm359, %v532, 0
        %537 = vmatprep.subr.mxu0 0.0
        %538 = vmatpush1.xpose.msra.mxu0 %v535
        %539 = vmatprep.subr.mxu0 0.0
        %540 = vmatpush1.xpose.msra.mxu0 0.0
        %541 = vmatprep.subr.mxu0 0.0
        %542 = vmatpush1.xpose.msra.mxu0 0.0
        %543 = vmatprep.subr.mxu0 0.0
        %544 = vmatpush1.xpose.msra.mxu0 0.0
        %545 = vmatprep.subr.mxu0 0.0
        %546 = vmatpush1.xpose.msra.mxu0 0.0
        %547 = vmatprep.subr.mxu0 0.0
        %548 = vmatpush1.xpose.msra.mxu0 0.0
        %549 = vmatprep.subr.mxu0 0.0
        %550 = vmatpush1.xpose.msra.mxu0 0.0
        %551 = vmatprep.subr.mxu0 0.0
        %552 = vmatpush1.xpose.msra.mxu0 0.0
        %553 = vmatprep.subr.mxu0 0.0
        %554 = vmatpush1.xpose.msra.mxu0 0.0
        %555 = vmatprep.subr.mxu0 0.0
        %556 = vmatpush1.xpose.msra.mxu0 0.0
        %557 = vmatprep.subr.mxu0 0.0
        %558 = vmatpush1.xpose.msra.mxu0 0.0
        %559 = vmatprep.subr.mxu0 0.0
        %560 = vmatpush1.xpose.msra.mxu0 0.0
        %561 = vmatprep.subr.mxu0 0.0
        %562 = vmatpush1.xpose.msra.mxu0 0.0
        %563 = vmatprep.subr.mxu0 0.0
        %564 = vmatpush1.xpose.msra.mxu0 0.0
        %565 = vmatprep.subr.mxu0 0.0
        %566 = vmatpush1.xpose.msra.mxu0 0.0
        %567 = vmatprep.subr.mxu0 0.0
        %568 = vmatpush1.xpose.msra.mxu0 0.0
        %569 = vmatprep.subr.mxu0 0.0
        %570 = vmatpush1.xpose.msra.mxu0 0.0
        %571 = vmatprep.subr.mxu0 0.0
        %572 = vmatpush1.xpose.msra.mxu0 0.0
        %573 = vmatprep.subr.mxu0 0.0
        %574 = vmatpush1.xpose.msra.mxu0 0.0
        %575 = vmatprep.subr.mxu0 0.0
        %576 = vmatpush1.xpose.msra.mxu0 0.0
        %577 = vmatprep.subr.mxu0 0.0
        %578 = vmatpush1.xpose.msra.mxu0 0.0
        %579 = vmatprep.subr.mxu0 0.0
        %580 = vmatpush1.xpose.msra.mxu0 0.0
        %581 = vmatprep.subr.mxu0 0.0
        %582 = vmatpush1.xpose.msra.mxu0 0.0
        %583 = vmatprep.subr.mxu0 0.0
        %584 = vmatpush1.xpose.msra.mxu0 0.0
        %585 = vmatprep.subr.mxu0 0.0
        %586 = vmatpush1.xpose.msra.mxu0 0.0
        %587 = vmatprep.subr.mxu0 0.0
        %588 = vmatpush1.xpose.msra.mxu0 0.0
        %589 = vmatprep.subr.mxu0 0.0
        %590 = vmatpush1.xpose.msra.mxu0 0.0
        %591 = vmatprep.subr.mxu0 0.0
        %592 = vmatpush1.xpose.msra.mxu0 0.0
        %593 = vmatprep.subr.mxu0 0.0
        %594 = vmatpush1.xpose.msra.mxu0 0.0
        %595 = vmatprep.subr.mxu0 0.0
        %596 = vmatpush1.xpose.msra.mxu0 0.0
        %597 = vmatprep.subr.mxu0 0.0
        %598 = vmatpush1.xpose.msra.mxu0 0.0
        %599 = vmatprep.subr.mxu0 0.0
        %600 = vmatpush1.xpose.msra.mxu0 0.0
        %601 = vmatprep.mubr.f32.mxu0 0.0
        %602 = vmatmul.mubr.f32.gmra.mrb[0].mxu0 %v533
        %v603 = vpop.f32.mrb[0].mxu0
        %v604 = vadd.f32 0.0, %v603
        %v605 = vpop.f32.mrb[0].mxu0
        %606 = vdwg.mxu0
        %v607 = vsel %vm359, %v604, -inf
        %608 = vmax.xlane.f32.xlu0 %v607
        %v609 = vpop.xlane.xlu0 %608
        %v610 = vsub.f32 -inf, %v609
        %v611 = vmul.f32 %v610, 1.442695
        %v612 = vpow.pop %v611
        %v613 = vsub.f32 %v604, %v609
        %v614 = vmul.f32 %v613, 1.442695
        %v615 = vpow.pop %v614
        %v616 = vmul.f32 %v612, 0.0
        %v617 = vsel %vm359, %v615, 0.0
        %618 = vadd.xlane.f32.xlu0 %v617
        %v619 = vpop.xlane.xlu0 %618
        %v620 = vadd.f32 %v616, %v619
        %621 = vrot.lane.b32.xlu0 %v352, 56
        %v622 = vpop.permute.xlu0 %621
        %v625 = vsel %vm359, %v615, 0
        %627 = vmatprep.subr.mxu0 0.0
        %628 = vmatpush1.msra.mxu0 %v622
        %629 = vmatprep.subr.mxu0 0.0
        %630 = vmatpush1.msra.mxu0 0.0
        %631 = vmatprep.subr.mxu0 0.0
        %632 = vmatpush1.msra.mxu0 0.0
        %633 = vmatprep.subr.mxu0 0.0
        %634 = vmatpush1.msra.mxu0 0.0
        %635 = vmatprep.subr.mxu0 0.0
        %636 = vmatpush1.msra.mxu0 0.0
        %637 = vmatprep.subr.mxu0 0.0
        %638 = vmatpush1.msra.mxu0 0.0
        %639 = vmatprep.subr.mxu0 0.0
        %640 = vmatpush1.msra.mxu0 0.0
        %641 = vmatprep.subr.mxu0 0.0
        %642 = vmatpush1.msra.mxu0 0.0
        %643 = vmatprep.subr.mxu0 0.0
        %644 = vmatpush1.msra.mxu0 0.0
        %645 = vmatprep.subr.mxu0 0.0
        %646 = vmatpush1.msra.mxu0 0.0
        %647 = vmatprep.subr.mxu0 0.0
        %648 = vmatpush1.msra.mxu0 0.0
        %649 = vmatprep.subr.mxu0 0.0
        %650 = vmatpush1.msra.mxu0 0.0
        %651 = vmatprep.subr.mxu0 0.0
        %652 = vmatpush1.msra.mxu0 0.0
        %653 = vmatprep.subr.mxu0 0.0
        %654 = vmatpush1.msra.mxu0 0.0
        %655 = vmatprep.subr.mxu0 0.0
        %656 = vmatpush1.msra.mxu0 0.0
        %657 = vmatprep.subr.mxu0 0.0
        %658 = vmatpush1.msra.mxu0 0.0
        %659 = vmatprep.subr.mxu0 0.0
        %660 = vmatpush1.msra.mxu0 0.0
        %661 = vmatprep.subr.mxu0 0.0
        %662 = vmatpush1.msra.mxu0 0.0
        %663 = vmatprep.subr.mxu0 0.0
        %664 = vmatpush1.msra.mxu0 0.0
        %665 = vmatprep.subr.mxu0 0.0
        %666 = vmatpush1.msra.mxu0 0.0
        %667 = vmatprep.subr.mxu0 0.0
        %668 = vmatpush1.msra.mxu0 0.0
        %669 = vmatprep.subr.mxu0 0.0
        %670 = vmatpush1.msra.mxu0 0.0
        %671 = vmatprep.subr.mxu0 0.0
        %672 = vmatpush1.msra.mxu0 0.0
        %673 = vmatprep.subr.mxu0 0.0
        %674 = vmatpush1.msra.mxu0 0.0
        %675 = vmatprep.subr.mxu0 0.0
        %676 = vmatpush1.msra.mxu0 0.0
        %677 = vmatprep.subr.mxu0 0.0
        %678 = vmatpush1.msra.mxu0 0.0
        %679 = vmatprep.subr.mxu0 0.0
        %680 = vmatpush1.msra.mxu0 0.0
        %681 = vmatprep.subr.mxu0 0.0
        %682 = vmatpush1.msra.mxu0 0.0
        %683 = vmatprep.subr.mxu0 0.0
        %684 = vmatpush1.msra.mxu0 0.0
        %685 = vmatprep.subr.mxu0 0.0
        %686 = vmatpush1.msra.mxu0 0.0
        %687 = vmatprep.subr.mxu0 0.0
        %688 = vmatpush1.msra.mxu0 0.0
        %689 = vmatprep.subr.mxu0 0.0
        %690 = vmatpush1.msra.mxu0 0.0
        %691 = vmatprep.mubr.f32.mxu0 0.0
        %692 = vmatmul.mubr.f32.gmra.mrb[0].mxu0 %v625
        %v693 = vpop.f32.mrb[0].mxu0
        %v694 = vadd.f32 0.0, %v693
        %v695 = vpop.f32.mrb[0].mxu0
        %696 = vdwg.mxu0
        %v697 = vadd.f32 %v616, %v694
        %v698 = vrcp.pop %v620
        %v699 = vmul.f32 %v697, %v698
        %s700 = scalar_lea.vmem [#allocation7], 8
        %v701 = vld [vmem:[%s700] sm:$0xff]
        %v703 = vsel %vm359, %v699, 0
        %705 = vmatprep.subr.mxu0 0.0
        %706 = vmatpush1.msra.mxu0 %v701
        %707 = vmatprep.subr.mxu0 0.0
        %708 = vmatpush1.msra.mxu0 0.0
        %709 = vmatprep.subr.mxu0 0.0
        %710 = vmatpush1.msra.mxu0 0.0
        %711 = vmatprep.subr.mxu0 0.0
        %712 = vmatpush1.msra.mxu0 0.0
        %713 = vmatprep.subr.mxu0 0.0
        %714 = vmatpush1.msra.mxu0 0.0
        %715 = vmatprep.subr.mxu0 0.0
        %716 = vmatpush1.msra.mxu0 0.0
        %717 = vmatprep.subr.mxu0 0.0
        %718 = vmatpush1.msra.mxu0 0.0
        %719 = vmatprep.subr.mxu0 0.0
        %720 = vmatpush1.msra.mxu0 0.0
        %721 = vmatprep.subr.mxu0 0.0
        %722 = vmatpush1.msra.mxu0 0.0
        %723 = vmatprep.subr.mxu0 0.0
        %724 = vmatpush1.msra.mxu0 0.0
        %725 = vmatprep.subr.mxu0 0.0
        %726 = vmatpush1.msra.mxu0 0.0
        %727 = vmatprep.subr.mxu0 0.0
        %728 = vmatpush1.msra.mxu0 0.0
        %729 = vmatprep.subr.mxu0 0.0
        %730 = vmatpush1.msra.mxu0 0.0
        %731 = vmatprep.subr.mxu0 0.0
        %732 = vmatpush1.msra.mxu0 0.0
        %733 = vmatprep.subr.mxu0 0.0
        %734 = vmatpush1.msra.mxu0 0.0
        %735 = vmatprep.subr.mxu0 0.0
        %736 = vmatpush1.msra.mxu0 0.0
        %737 = vmatprep.subr.mxu0 0.0
        %738 = vmatpush1.msra.mxu0 0.0
        %739 = vmatprep.subr.mxu0 0.0
        %740 = vmatpush1.msra.mxu0 0.0
        %741 = vmatprep.subr.mxu0 0.0
        %742 = vmatpush1.msra.mxu0 0.0
        %743 = vmatprep.subr.mxu0 0.0
        %744 = vmatpush1.msra.mxu0 0.0
        %745 = vmatprep.subr.mxu0 0.0
        %746 = vmatpush1.msra.mxu0 0.0
        %747 = vmatprep.subr.mxu0 0.0
        %748 = vmatpush1.msra.mxu0 0.0
        %749 = vmatprep.subr.mxu0 0.0
        %750 = vmatpush1.msra.mxu0 0.0
        %751 = vmatprep.subr.mxu0 0.0
        %752 = vmatpush1.msra.mxu0 0.0
        %753 = vmatprep.subr.mxu0 0.0
        %754 = vmatpush1.msra.mxu0 0.0
        %755 = vmatprep.subr.mxu0 0.0
        %756 = vmatpush1.msra.mxu0 0.0
        %757 = vmatprep.subr.mxu0 0.0
        %758 = vmatpush1.msra.mxu0 0.0
        %759 = vmatprep.subr.mxu0 0.0
        %760 = vmatpush1.msra.mxu0 0.0
        %761 = vmatprep.subr.mxu0 0.0
        %762 = vmatpush1.msra.mxu0 0.0
        %763 = vmatprep.subr.mxu0 0.0
        %764 = vmatpush1.msra.mxu0 0.0
        %765 = vmatprep.subr.mxu0 0.0
        %766 = vmatpush1.msra.mxu0 0.0
        %767 = vmatprep.subr.mxu0 0.0
        %768 = vmatpush1.msra.mxu0 0.0
        %769 = vmatprep.mubr.f32.mxu0 0.0
        %770 = vmatmul.mubr.f32.gmra.mrb[0].mxu0 %v703
        %v771 = vpop.f32.mrb[0].mxu0
        %v772 = vadd.f32 0.0, %v771
        %v773 = vpop.f32.mrb[0].mxu0
        %774 = vdwg.mxu0
        %v776 = vsel %vm359, %v527, 0
        %778 = vmatprep.subr.mxu0 0.0
        %779 = vmatpush1.msra.mxu0 %v528
        %780 = vmatprep.subr.mxu0 0.0
        %781 = vmatpush1.msra.mxu0 0.0
        %782 = vmatprep.subr.mxu0 0.0
        %783 = vmatpush1.msra.mxu0 0.0
        %784 = vmatprep.subr.mxu0 0.0
        %785 = vmatpush1.msra.mxu0 0.0
        %786 = vmatprep.subr.mxu0 0.0
        %787 = vmatpush1.msra.mxu0 0.0
        %788 = vmatprep.subr.mxu0 0.0
        %789 = vmatpush1.msra.mxu0 0.0
        %790 = vmatprep.subr.mxu0 0.0
        %791 = vmatpush1.msra.mxu0 0.0
        %792 = vmatprep.subr.mxu0 0.0
        %793 = vmatpush1.msra.mxu0 0.0
        %794 = vmatprep.subr.mxu0 0.0
        %795 = vmatpush1.msra.mxu0 0.0
        %796 = vmatprep.subr.mxu0 0.0
        %797 = vmatpush1.msra.mxu0 0.0
        %798 = vmatprep.subr.mxu0 0.0
        %799 = vmatpush1.msra.mxu0 0.0
        %800 = vmatprep.subr.mxu0 0.0
        %801 = vmatpush1.msra.mxu0 0.0
        %802 = vmatprep.subr.mxu0 0.0
        %803 = vmatpush1.msra.mxu0 0.0
        %804 = vmatprep.subr.mxu0 0.0
        %805 = vmatpush1.msra.mxu0 0.0
        %806 = vmatprep.subr.mxu0 0.0
        %807 = vmatpush1.msra.mxu0 0.0
        %808 = vmatprep.subr.mxu0 0.0
        %809 = vmatpush1.msra.mxu0 0.0
        %810 = vmatprep.subr.mxu0 0.0
        %811 = vmatpush1.msra.mxu0 0.0
        %812 = vmatprep.subr.mxu0 0.0
        %813 = vmatpush1.msra.mxu0 0.0
        %814 = vmatprep.subr.mxu0 0.0
        %815 = vmatpush1.msra.mxu0 0.0
        %816 = vmatprep.subr.mxu0 0.0
        %817 = vmatpush1.msra.mxu0 0.0
        %818 = vmatprep.subr.mxu0 0.0
        %819 = vmatpush1.msra.mxu0 0.0
        %820 = vmatprep.subr.mxu0 0.0
        %821 = vmatpush1.msra.mxu0 0.0
        %822 = vmatprep.subr.mxu0 0.0
        %823 = vmatpush1.msra.mxu0 0.0
        %824 = vmatprep.subr.mxu0 0.0
        %825 = vmatpush1.msra.mxu0 0.0
        %826 = vmatprep.subr.mxu0 0.0
        %827 = vmatpush1.msra.mxu0 0.0
        %828 = vmatprep.subr.mxu0 0.0
        %829 = vmatpush1.msra.mxu0 0.0
        %830 = vmatprep.subr.mxu0 0.0
        %831 = vmatpush1.msra.mxu0 0.0
        %832 = vmatprep.subr.mxu0 0.0
        %833 = vmatpush1.msra.mxu0 0.0
        %834 = vmatprep.subr.mxu0 0.0
        %835 = vmatpush1.msra.mxu0 0.0
        %836 = vmatprep.subr.mxu0 0.0
        %837 = vmatpush1.msra.mxu0 0.0
        %838 = vmatprep.subr.mxu0 0.0
        %839 = vmatpush1.msra.mxu0 0.0
        %840 = vmatprep.subr.mxu0 0.0
        %841 = vmatpush1.msra.mxu0 0.0
        %842 = vmatprep.mubr.f32.mxu0 0.0
        %843 = vmatmul.mubr.f32.gmra.mrb[0].mxu0 %v776
        %v844 = vpop.f32.mrb[0].mxu0
        %v845 = vadd.f32 %v772, %v844
        %v846 = vpop.f32.mrb[0].mxu0
        %847 = vdwg.mxu0
        %848 = vrot.lane.b32.xlu0 %v355, 112
        %v849 = vpop.permute.xlu0 %848
        %850 = vrot.lane.b32.xlu0 %v352, 80
        %v851 = vpop.permute.xlu0 %850
        %v852 = vsel %vm359, %v849, 0
        %v854 = vsel %vm359, %v851, 0
        %856 = vmatprep.subr.mxu0 0.0
        %857 = vmatpush1.xpose.msra.mxu0 %v854
        %858 = vmatprep.subr.mxu0 0.0
        %859 = vmatpush1.xpose.msra.mxu0 0.0
        %860 = vmatprep.subr.mxu0 0.0
        %861 = vmatpush1.xpose.msra.mxu0 0.0
        %862 = vmatprep.subr.mxu0 0.0
        %863 = vmatpush1.xpose.msra.mxu0 0.0
        %864 = vmatprep.subr.mxu0 0.0
        %865 = vmatpush1.xpose.msra.mxu0 0.0
        %866 = vmatprep.subr.mxu0 0.0
        %867 = vmatpush1.xpose.msra.mxu0 0.0
        %868 = vmatprep.subr.mxu0 0.0
        %869 = vmatpush1.xpose.msra.mxu0 0.0
        %870 = vmatprep.subr.mxu0 0.0
        %871 = vmatpush1.xpose.msra.mxu0 0.0
        %872 = vmatprep.subr.mxu0 0.0
        %873 = vmatpush1.xpose.msra.mxu0 0.0
        %874 = vmatprep.subr.mxu0 0.0
        %875 = vmatpush1.xpose.msra.mxu0 0.0
        %876 = vmatprep.subr.mxu0 0.0
        %877 = vmatpush1.xpose.msra.mxu0 0.0
        %878 = vmatprep.subr.mxu0 0.0
        %879 = vmatpush1.xpose.msra.mxu0 0.0
        %880 = vmatprep.subr.mxu0 0.0
        %881 = vmatpush1.xpose.msra.mxu0 0.0
        %882 = vmatprep.subr.mxu0 0.0
        %883 = vmatpush1.xpose.msra.mxu0 0.0
        %884 = vmatprep.subr.mxu0 0.0
        %885 = vmatpush1.xpose.msra.mxu0 0.0
        %886 = vmatprep.subr.mxu0 0.0
        %887 = vmatpush1.xpose.msra.mxu0 0.0
        %888 = vmatprep.subr.mxu0 0.0
        %889 = vmatpush1.xpose.msra.mxu0 0.0
        %890 = vmatprep.subr.mxu0 0.0
        %891 = vmatpush1.xpose.msra.mxu0 0.0
        %892 = vmatprep.subr.mxu0 0.0
        %893 = vmatpush1.xpose.msra.mxu0 0.0
        %894 = vmatprep.subr.mxu0 0.0
        %895 = vmatpush1.xpose.msra.mxu0 0.0
        %896 = vmatprep.subr.mxu0 0.0
        %897 = vmatpush1.xpose.msra.mxu0 0.0
        %898 = vmatprep.subr.mxu0 0.0
        %899 = vmatpush1.xpose.msra.mxu0 0.0
        %900 = vmatprep.subr.mxu0 0.0
        %901 = vmatpush1.xpose.msra.mxu0 0.0
        %902 = vmatprep.subr.mxu0 0.0
        %903 = vmatpush1.xpose.msra.mxu0 0.0
        %904 = vmatprep.subr.mxu0 0.0
        %905 = vmatpush1.xpose.msra.mxu0 0.0
        %906 = vmatprep.subr.mxu0 0.0
        %907 = vmatpush1.xpose.msra.mxu0 0.0
        %908 = vmatprep.subr.mxu0 0.0
        %909 = vmatpush1.xpose.msra.mxu0 0.0
        %910 = vmatprep.subr.mxu0 0.0
        %911 = vmatpush1.xpose.msra.mxu0 0.0
        %912 = vmatprep.subr.mxu0 0.0
        %913 = vmatpush1.xpose.msra.mxu0 0.0
        %914 = vmatprep.subr.mxu0 0.0
        %915 = vmatpush1.xpose.msra.mxu0 0.0
        %916 = vmatprep.subr.mxu0 0.0
        %917 = vmatpush1.xpose.msra.mxu0 0.0
        %918 = vmatprep.subr.mxu0 0.0
        %919 = vmatpush1.xpose.msra.mxu0 0.0
        %920 = vmatprep.mubr.f32.mxu0 0.0
        %921 = vmatmul.mubr.f32.gmra.mrb[0].mxu0 %v852
        %v922 = vpop.f32.mrb[0].mxu0
        %v923 = vadd.f32 0.0, %v922
        %v924 = vpop.f32.mrb[0].mxu0
        %925 = vdwg.mxu0
        %v926 = vsel %vm359, %v923, -inf
        %927 = vmax.xlane.f32.xlu0 %v926
        %v928 = vpop.xlane.xlu0 %927
        %v929 = vsub.f32 -inf, %v928
        %v930 = vmul.f32 %v929, 1.442695
        %v931 = vpow.pop %v930
        %v932 = vsub.f32 %v923, %v928
        %v933 = vmul.f32 %v932, 1.442695
        %v934 = vpow.pop %v933
        %v935 = vmul.f32 %v931, 0.0
        %v936 = vsel %vm359, %v934, 0.0
        %937 = vadd.xlane.f32.xlu0 %v936
        %v938 = vpop.xlane.xlu0 %937
        %v939 = vadd.f32 %v935, %v938
        %940 = vrot.lane.b32.xlu0 %v352, 48
        %v941 = vpop.permute.xlu0 %940
        %v944 = vsel %vm359, %v934, 0
        %946 = vmatprep.subr.mxu0 0.0
        %947 = vmatpush1.msra.mxu0 %v941
        %948 = vmatprep.subr.mxu0 0.0
        %949 = vmatpush1.msra.mxu0 0.0
        %950 = vmatprep.subr.mxu0 0.0
        %951 = vmatpush1.msra.mxu0 0.0
        %952 = vmatprep.subr.mxu0 0.0
        %953 = vmatpush1.msra.mxu0 0.0
        %954 = vmatprep.subr.mxu0 0.0
        %955 = vmatpush1.msra.mxu0 0.0
        %956 = vmatprep.subr.mxu0 0.0
        %957 = vmatpush1.msra.mxu0 0.0
        %958 = vmatprep.subr.mxu0 0.0
        %959 = vmatpush1.msra.mxu0 0.0
        %960 = vmatprep.subr.mxu0 0.0
        %961 = vmatpush1.msra.mxu0 0.0
        %962 = vmatprep.subr.mxu0 0.0
        %963 = vmatpush1.msra.mxu0 0.0
        %964 = vmatprep.subr.mxu0 0.0
        %965 = vmatpush1.msra.mxu0 0.0
        %966 = vmatprep.subr.mxu0 0.0
        %967 = vmatpush1.msra.mxu0 0.0
        %968 = vmatprep.subr.mxu0 0.0
        %969 = vmatpush1.msra.mxu0 0.0
        %970 = vmatprep.subr.mxu0 0.0
        %971 = vmatpush1.msra.mxu0 0.0
        %972 = vmatprep.subr.mxu0 0.0
        %973 = vmatpush1.msra.mxu0 0.0
        %974 = vmatprep.subr.mxu0 0.0
        %975 = vmatpush1.msra.mxu0 0.0
        %976 = vmatprep.subr.mxu0 0.0
        %977 = vmatpush1.msra.mxu0 0.0
        %978 = vmatprep.subr.mxu0 0.0
        %979 = vmatpush1.msra.mxu0 0.0
        %980 = vmatprep.subr.mxu0 0.0
        %981 = vmatpush1.msra.mxu0 0.0
        %982 = vmatprep.subr.mxu0 0.0
        %983 = vmatpush1.msra.mxu0 0.0
        %984 = vmatprep.subr.mxu0 0.0
        %985 = vmatpush1.msra.mxu0 0.0
        %986 = vmatprep.subr.mxu0 0.0
        %987 = vmatpush1.msra.mxu0 0.0
        %988 = vmatprep.subr.mxu0 0.0
        %989 = vmatpush1.msra.mxu0 0.0
        %990 = vmatprep.subr.mxu0 0.0
        %991 = vmatpush1.msra.mxu0 0.0
        %992 = vmatprep.subr.mxu0 0.0
        %993 = vmatpush1.msra.mxu0 0.0
        %994 = vmatprep.subr.mxu0 0.0
        %995 = vmatpush1.msra.mxu0 0.0
        %996 = vmatprep.subr.mxu0 0.0
        %997 = vmatpush1.msra.mxu0 0.0
        %998 = vmatprep.subr.mxu0 0.0
        %999 = vmatpush1.msra.mxu0 0.0
        %1000 = vmatprep.subr.mxu0 0.0
        %1001 = vmatpush1.msra.mxu0 0.0
        %1002 = vmatprep.subr.mxu0 0.0
        %1003 = vmatpush1.msra.mxu0 0.0
        %1004 = vmatprep.subr.mxu0 0.0
        %1005 = vmatpush1.msra.mxu0 0.0
        %1006 = vmatprep.subr.mxu0 0.0
        %1007 = vmatpush1.msra.mxu0 0.0
        %1008 = vmatprep.subr.mxu0 0.0
        %1009 = vmatpush1.msra.mxu0 0.0
        %1010 = vmatprep.mubr.f32.mxu0 0.0
        %1011 = vmatmul.mubr.f32.gmra.mrb[0].mxu0 %v944
        %v1012 = vpop.f32.mrb[0].mxu0
        %v1013 = vadd.f32 0.0, %v1012
        %v1014 = vpop.f32.mrb[0].mxu0
        %1015 = vdwg.mxu0
        %v1016 = vadd.f32 %v935, %v1013
        %v1017 = vrcp.pop %v939
        %v1018 = vmul.f32 %v1016, %v1017
        %s1019 = scalar_lea.vmem [#allocation7], 16
        %v1020 = vld [vmem:[%s1019] sm:$0xff]
        %v1022 = vsel %vm359, %v1018, 0
        %1024 = vmatprep.subr.mxu0 0.0
        %1025 = vmatpush1.msra.mxu0 %v1020
        %1026 = vmatprep.subr.mxu0 0.0
        %1027 = vmatpush1.msra.mxu0 0.0
        %1028 = vmatprep.subr.mxu0 0.0
        %1029 = vmatpush1.msra.mxu0 0.0
        %1030 = vmatprep.subr.mxu0 0.0
        %1031 = vmatpush1.msra.mxu0 0.0
        %1032 = vmatprep.subr.mxu0 0.0
        %1033 = vmatpush1.msra.mxu0 0.0
        %1034 = vmatprep.subr.mxu0 0.0
        %1035 = vmatpush1.msra.mxu0 0.0
        %1036 = vmatprep.subr.mxu0 0.0
        %1037 = vmatpush1.msra.mxu0 0.0
        %1038 = vmatprep.subr.mxu0 0.0
        %1039 = vmatpush1.msra.mxu0 0.0
        %1040 = vmatprep.subr.mxu0 0.0
        %1041 = vmatpush1.msra.mxu0 0.0
        %1042 = vmatprep.subr.mxu0 0.0
        %1043 = vmatpush1.msra.mxu0 0.0
        %1044 = vmatprep.subr.mxu0 0.0
        %1045 = vmatpush1.msra.mxu0 0.0
        %1046 = vmatprep.subr.mxu0 0.0
        %1047 = vmatpush1.msra.mxu0 0.0
        %1048 = vmatprep.subr.mxu0 0.0
        %1049 = vmatpush1.msra.mxu0 0.0
        %1050 = vmatprep.subr.mxu0 0.0
        %1051 = vmatpush1.msra.mxu0 0.0
        %1052 = vmatprep.subr.mxu0 0.0
        %1053 = vmatpush1.msra.mxu0 0.0
        %1054 = vmatprep.subr.mxu0 0.0
        %1055 = vmatpush1.msra.mxu0 0.0
        %1056 = vmatprep.subr.mxu0 0.0
        %1057 = vmatpush1.msra.mxu0 0.0
        %1058 = vmatprep.subr.mxu0 0.0
        %1059 = vmatpush1.msra.mxu0 0.0
        %1060 = vmatprep.subr.mxu0 0.0
        %1061 = vmatpush1.msra.mxu0 0.0
        %1062 = vmatprep.subr.mxu0 0.0
        %1063 = vmatpush1.msra.mxu0 0.0
        %1064 = vmatprep.subr.mxu0 0.0
        %1065 = vmatpush1.msra.mxu0 0.0
        %1066 = vmatprep.subr.mxu0 0.0
        %1067 = vmatpush1.msra.mxu0 0.0
        %1068 = vmatprep.subr.mxu0 0.0
        %1069 = vmatpush1.msra.mxu0 0.0
        %1070 = vmatprep.subr.mxu0 0.0
        %1071 = vmatpush1.msra.mxu0 0.0
        %1072 = vmatprep.subr.mxu0 0.0
        %1073 = vmatpush1.msra.mxu0 0.0
        %1074 = vmatprep.subr.mxu0 0.0
        %1075 = vmatpush1.msra.mxu0 0.0
        %1076 = vmatprep.subr.mxu0 0.0
        %1077 = vmatpush1.msra.mxu0 0.0
        %1078 = vmatprep.subr.mxu0 0.0
        %1079 = vmatpush1.msra.mxu0 0.0
        %1080 = vmatprep.subr.mxu0 0.0
        %1081 = vmatpush1.msra.mxu0 0.0
        %1082 = vmatprep.subr.mxu0 0.0
        %1083 = vmatpush1.msra.mxu0 0.0
        %1084 = vmatprep.subr.mxu0 0.0
        %1085 = vmatpush1.msra.mxu0 0.0
        %1086 = vmatprep.subr.mxu0 0.0
        %1087 = vmatpush1.msra.mxu0 0.0
        %1088 = vmatprep.mubr.f32.mxu0 0.0
        %1089 = vmatmul.mubr.f32.gmra.mrb[0].mxu0 %v1022
        %v1090 = vpop.f32.mrb[0].mxu0
        %v1091 = vadd.f32 0.0, %v1090
        %v1092 = vpop.f32.mrb[0].mxu0
        %1093 = vdwg.mxu0
        %v1094 = vadd.f32 %v845, %v1091
        %1095 = vrot.lane.b32.xlu0 %v355, 104
        %v1096 = vpop.permute.xlu0 %1095
        %1097 = vrot.lane.b32.xlu0 %v352, 72
        %v1098 = vpop.permute.xlu0 %1097
        %v1099 = vsel %vm359, %v1096, 0
        %v1101 = vsel %vm359, %v1098, 0
        %1103 = vmatprep.subr.mxu0 0.0
        %1104 = vmatpush1.xpose.msra.mxu0 %v1101
        %1105 = vmatprep.subr.mxu0 0.0
        %1106 = vmatpush1.xpose.msra.mxu0 0.0
        %1107 = vmatprep.subr.mxu0 0.0
        %1108 = vmatpush1.xpose.msra.mxu0 0.0
        %1109 = vmatprep.subr.mxu0 0.0
        %1110 = vmatpush1.xpose.msra.mxu0 0.0
        %1111 = vmatprep.subr.mxu0 0.0
        %1112 = vmatpush1.xpose.msra.mxu0 0.0
        %1113 = vmatprep.subr.mxu0 0.0
        %1114 = vmatpush1.xpose.msra.mxu0 0.0
        %1115 = vmatprep.subr.mxu0 0.0
        %1116 = vmatpush1.xpose.msra.mxu0 0.0
        %1117 = vmatprep.subr.mxu0 0.0
        %1118 = vmatpush1.xpose.msra.mxu0 0.0
        %1119 = vmatprep.subr.mxu0 0.0
        %1120 = vmatpush1.xpose.msra.mxu0 0.0
        %1121 = vmatprep.subr.mxu0 0.0
        %1122 = vmatpush1.xpose.msra.mxu0 0.0
        %1123 = vmatprep.subr.mxu0 0.0
        %1124 = vmatpush1.xpose.msra.mxu0 0.0
        %1125 = vmatprep.subr.mxu0 0.0
        %1126 = vmatpush1.xpose.msra.mxu0 0.0
        %1127 = vmatprep.subr.mxu0 0.0
        %1128 = vmatpush1.xpose.msra.mxu0 0.0
        %1129 = vmatprep.subr.mxu0 0.0
        %1130 = vmatpush1.xpose.msra.mxu0 0.0
        %1131 = vmatprep.subr.mxu0 0.0
        %1132 = vmatpush1.xpose.msra.mxu0 0.0
        %1133 = vmatprep.subr.mxu0 0.0
        %1134 = vmatpush1.xpose.msra.mxu0 0.0
        %1135 = vmatprep.subr.mxu0 0.0
        %1136 = vmatpush1.xpose.msra.mxu0 0.0
        %1137 = vmatprep.subr.mxu0 0.0
        %1138 = vmatpush1.xpose.msra.mxu0 0.0
        %1139 = vmatprep.subr.mxu0 0.0
        %1140 = vmatpush1.xpose.msra.mxu0 0.0
        %1141 = vmatprep.subr.mxu0 0.0
        %1142 = vmatpush1.xpose.msra.mxu0 0.0
        %1143 = vmatprep.subr.mxu0 0.0
        %1144 = vmatpush1.xpose.msra.mxu0 0.0
        %1145 = vmatprep.subr.mxu0 0.0
        %1146 = vmatpush1.xpose.msra.mxu0 0.0
        %1147 = vmatprep.subr.mxu0 0.0
        %1148 = vmatpush1.xpose.msra.mxu0 0.0
        %1149 = vmatprep.subr.mxu0 0.0
        %1150 = vmatpush1.xpose.msra.mxu0 0.0
        %1151 = vmatprep.subr.mxu0 0.0
        %1152 = vmatpush1.xpose.msra.mxu0 0.0
        %1153 = vmatprep.subr.mxu0 0.0
        %1154 = vmatpush1.xpose.msra.mxu0 0.0
        %1155 = vmatprep.subr.mxu0 0.0
        %1156 = vmatpush1.xpose.msra.mxu0 0.0
        %1157 = vmatprep.subr.mxu0 0.0
        %1158 = vmatpush1.xpose.msra.mxu0 0.0
        %1159 = vmatprep.subr.mxu0 0.0
        %1160 = vmatpush1.xpose.msra.mxu0 0.0
        %1161 = vmatprep.subr.mxu0 0.0
        %1162 = vmatpush1.xpose.msra.mxu0 0.0
        %1163 = vmatprep.subr.mxu0 0.0
        %1164 = vmatpush1.xpose.msra.mxu0 0.0
        %1165 = vmatprep.subr.mxu0 0.0
        %1166 = vmatpush1.xpose.msra.mxu0 0.0
        %1167 = vmatprep.mubr.f32.mxu0 0.0
        %1168 = vmatmul.mubr.f32.gmra.mrb[0].mxu0 %v1099
        %v1169 = vpop.f32.mrb[0].mxu0
        %v1170 = vadd.f32 0.0, %v1169
        %v1171 = vpop.f32.mrb[0].mxu0
        %1172 = vdwg.mxu0
        %v1173 = vsel %vm359, %v1170, -inf
        %1174 = vmax.xlane.f32.xlu0 %v1173
        %v1175 = vpop.xlane.xlu0 %1174
        %v1176 = vsub.f32 -inf, %v1175
        %v1177 = vmul.f32 %v1176, 1.442695
        %v1178 = vpow.pop %v1177
        %v1179 = vsub.f32 %v1170, %v1175
        %v1180 = vmul.f32 %v1179, 1.442695
        %v1181 = vpow.pop %v1180
        %v1182 = vmul.f32 %v1178, 0.0
        %v1183 = vsel %vm359, %v1181, 0.0
        %1184 = vadd.xlane.f32.xlu0 %v1183
        %v1185 = vpop.xlane.xlu0 %1184
        %v1186 = vadd.f32 %v1182, %v1185
        %1187 = vrot.lane.b32.xlu0 %v352, 40
        %v1188 = vpop.permute.xlu0 %1187
        %v1191 = vsel %vm359, %v1181, 0
        %1193 = vmatprep.subr.mxu0 0.0
        %1194 = vmatpush1.msra.mxu0 %v1188
        %1195 = vmatprep.subr.mxu0 0.0
        %1196 = vmatpush1.msra.mxu0 0.0
        %1197 = vmatprep.subr.mxu0 0.0
        %1198 = vmatpush1.msra.mxu0 0.0
        %1199 = vmatprep.subr.mxu0 0.0
        %1200 = vmatpush1.msra.mxu0 0.0
        %1201 = vmatprep.subr.mxu0 0.0
        %1202 = vmatpush1.msra.mxu0 0.0
        %1203 = vmatprep.subr.mxu0 0.0
        %1204 = vmatpush1.msra.mxu0 0.0
        %1205 = vmatprep.subr.mxu0 0.0
        %1206 = vmatpush1.msra.mxu0 0.0
        %1207 = vmatprep.subr.mxu0 0.0
        %1208 = vmatpush1.msra.mxu0 0.0
        %1209 = vmatprep.subr.mxu0 0.0
        %1210 = vmatpush1.msra.mxu0 0.0
        %1211 = vmatprep.subr.mxu0 0.0
        %1212 = vmatpush1.msra.mxu0 0.0
        %1213 = vmatprep.subr.mxu0 0.0
        %1214 = vmatpush1.msra.mxu0 0.0
        %1215 = vmatprep.subr.mxu0 0.0
        %1216 = vmatpush1.msra.mxu0 0.0
        %1217 = vmatprep.subr.mxu0 0.0
        %1218 = vmatpush1.msra.mxu0 0.0
        %1219 = vmatprep.subr.mxu0 0.0
        %1220 = vmatpush1.msra.mxu0 0.0
        %1221 = vmatprep.subr.mxu0 0.0
        %1222 = vmatpush1.msra.mxu0 0.0
        %1223 = vmatprep.subr.mxu0 0.0
        %1224 = vmatpush1.msra.mxu0 0.0
        %1225 = vmatprep.subr.mxu0 0.0
        %1226 = vmatpush1.msra.mxu0 0.0
        %1227 = vmatprep.subr.mxu0 0.0
        %1228 = vmatpush1.msra.mxu0 0.0
        %1229 = vmatprep.subr.mxu0 0.0
        %1230 = vmatpush1.msra.mxu0 0.0
        %1231 = vmatprep.subr.mxu0 0.0
        %1232 = vmatpush1.msra.mxu0 0.0
        %1233 = vmatprep.subr.mxu0 0.0
        %1234 = vmatpush1.msra.mxu0 0.0
        %1235 = vmatprep.subr.mxu0 0.0
        %1236 = vmatpush1.msra.mxu0 0.0
        %1237 = vmatprep.subr.mxu0 0.0
        %1238 = vmatpush1.msra.mxu0 0.0
        %1239 = vmatprep.subr.mxu0 0.0
        %1240 = vmatpush1.msra.mxu0 0.0
        %1241 = vmatprep.subr.mxu0 0.0
        %1242 = vmatpush1.msra.mxu0 0.0
        %1243 = vmatprep.subr.mxu0 0.0
        %1244 = vmatpush1.msra.mxu0 0.0
        %1245 = vmatprep.subr.mxu0 0.0
        %1246 = vmatpush1.msra.mxu0 0.0
        %1247 = vmatprep.subr.mxu0 0.0
        %1248 = vmatpush1.msra.mxu0 0.0
        %1249 = vmatprep.subr.mxu0 0.0
        %1250 = vmatpush1.msra.mxu0 0.0
        %1251 = vmatprep.subr.mxu0 0.0
        %1252 = vmatpush1.msra.mxu0 0.0
        %1253 = vmatprep.subr.mxu0 0.0
        %1254 = vmatpush1.msra.mxu0 0.0
        %1255 = vmatprep.subr.mxu0 0.0
        %1256 = vmatpush1.msra.mxu0 0.0
        %1257 = vmatprep.mubr.f32.mxu0 0.0
        %1258 = vmatmul.mubr.f32.gmra.mrb[0].mxu0 %v1191
        %v1259 = vpop.f32.mrb[0].mxu0
        %v1260 = vadd.f32 0.0, %v1259
        %v1261 = vpop.f32.mrb[0].mxu0
        %1262 = vdwg.mxu0
        %v1263 = vadd.f32 %v1182, %v1260
        %v1264 = vrcp.pop %v1186
        %v1265 = vmul.f32 %v1263, %v1264
        %s1266 = scalar_lea.vmem [#allocation7], 24
        %v1267 = vld [vmem:[%s1266] sm:$0xff]
        %v1269 = vsel %vm359, %v1265, 0
        %1271 = vmatprep.subr.mxu0 0.0
        %1272 = vmatpush1.msra.mxu0 %v1267
        %1273 = vmatprep.subr.mxu0 0.0
        %1274 = vmatpush1.msra.mxu0 0.0
        %1275 = vmatprep.subr.mxu0 0.0
        %1276 = vmatpush1.msra.mxu0 0.0
        %1277 = vmatprep.subr.mxu0 0.0
        %1278 = vmatpush1.msra.mxu0 0.0
        %1279 = vmatprep.subr.mxu0 0.0
        %1280 = vmatpush1.msra.mxu0 0.0
        %1281 = vmatprep.subr.mxu0 0.0
        %1282 = vmatpush1.msra.mxu0 0.0
        %1283 = vmatprep.subr.mxu0 0.0
        %1284 = vmatpush1.msra.mxu0 0.0
        %1285 = vmatprep.subr.mxu0 0.0
        %1286 = vmatpush1.msra.mxu0 0.0
        %1287 = vmatprep.subr.mxu0 0.0
        %1288 = vmatpush1.msra.mxu0 0.0
        %1289 = vmatprep.subr.mxu0 0.0
        %1290 = vmatpush1.msra.mxu0 0.0
        %1291 = vmatprep.subr.mxu0 0.0
        %1292 = vmatpush1.msra.mxu0 0.0
        %1293 = vmatprep.subr.mxu0 0.0
        %1294 = vmatpush1.msra.mxu0 0.0
        %1295 = vmatprep.subr.mxu0 0.0
        %1296 = vmatpush1.msra.mxu0 0.0
        %1297 = vmatprep.subr.mxu0 0.0
        %1298 = vmatpush1.msra.mxu0 0.0
        %1299 = vmatprep.subr.mxu0 0.0
        %1300 = vmatpush1.msra.mxu0 0.0
        %1301 = vmatprep.subr.mxu0 0.0
        %1302 = vmatpush1.msra.mxu0 0.0
        %1303 = vmatprep.subr.mxu0 0.0
        %1304 = vmatpush1.msra.mxu0 0.0
        %1305 = vmatprep.subr.mxu0 0.0
        %1306 = vmatpush1.msra.mxu0 0.0
        %1307 = vmatprep.subr.mxu0 0.0
        %1308 = vmatpush1.msra.mxu0 0.0
        %1309 = vmatprep.subr.mxu0 0.0
        %1310 = vmatpush1.msra.mxu0 0.0
        %1311 = vmatprep.subr.mxu0 0.0
        %1312 = vmatpush1.msra.mxu0 0.0
        %1313 = vmatprep.subr.mxu0 0.0
        %1314 = vmatpush1.msra.mxu0 0.0
        %1315 = vmatprep.subr.mxu0 0.0
        %1316 = vmatpush1.msra.mxu0 0.0
        %1317 = vmatprep.subr.mxu0 0.0
        %1318 = vmatpush1.msra.mxu0 0.0
        %1319 = vmatprep.subr.mxu0 0.0
        %1320 = vmatpush1.msra.mxu0 0.0
        %1321 = vmatprep.subr.mxu0 0.0
        %1322 = vmatpush1.msra.mxu0 0.0
        %1323 = vmatprep.subr.mxu0 0.0
        %1324 = vmatpush1.msra.mxu0 0.0
        %1325 = vmatprep.subr.mxu0 0.0
        %1326 = vmatpush1.msra.mxu0 0.0
        %1327 = vmatprep.subr.mxu0 0.0
        %1328 = vmatpush1.msra.mxu0 0.0
        %1329 = vmatprep.subr.mxu0 0.0
        %1330 = vmatpush1.msra.mxu0 0.0
        %1331 = vmatprep.subr.mxu0 0.0
        %1332 = vmatpush1.msra.mxu0 0.0
        %1333 = vmatprep.subr.mxu0 0.0
        %1334 = vmatpush1.msra.mxu0 0.0
        %1335 = vmatprep.mubr.f32.mxu0 0.0
        %1336 = vmatmul.mubr.f32.gmra.mrb[0].mxu0 %v1269
        %v1337 = vpop.f32.mrb[0].mxu0
        %v1338 = vadd.f32 0.0, %v1337
        %v1339 = vpop.f32.mrb[0].mxu0
        %1340 = vdwg.mxu0
        %v1341 = vadd.f32 %v1094, %v1338
        %v1342 = vld [vmem:[%s4] sm:$0x1]
        %v1344 = vlaneseq
        %v1345 = vshrl.u32 %v1344, 7
        %v1346 = vsub.s32 0, %v1345
        %v1347 = vrot.slane %v1342, %v1346
        %v1349 = vadd.f32 %v1341, %v1347
        %1350 = vst.msk [vmem:[%s268] sm:$0xff] %vm281, %v1349
        %s1351 = sand.u32 %s141, 1
        %s1352 = scalar_lea.sflag [#allocation4], %s1351
        %s1353 = sand.u32 %s141, 1
        %s1354 = smul.addr %s1353, 8
        %s1355 = scalar_lea.vmem [#allocation8], %s1354
        // Predicated region
        $region53: #{tpu_custom_call.1} parent=39 // pred_check
          %p1356 = pneg %p151
        $region54: #{tpu_custom_call.1} parent=39 // pred_check_branch
          %1358 = sbr.rel (%p1356) target = $region56
        $region55: #{tpu_custom_call.1} parent=39 // pred_region
          %s1360 = ssub.s32 128, 128
          %1361 = vsyncadd %s1352, %s1360
          %s1362 = smul.addr %s23, 128
          %s1363 = scalar_lea.hbm %s5, %s1362
          %s1365 = sshll.u32 %s1355, 4
          %s1366 = int_to_ptr.vmem [resolvable:$true] %s1365
          %1368 = dma.vmem_to_hbm [thread:$0]  %s1366, 128, %s1363, %s1352
        $region56: #{tpu_custom_call.1} parent=39 // pred_fallthru
          _
      $region40: #{tpu_custom_call.1} parent=5 // pred_fallthru
        _
      %p1369 = scmp.le.s32.totalorder 2, %s18
      // Predicated region
      $region57: #{tpu_custom_call.1} parent=5 // pred_check
        %p1370 = pneg %p1369
      $region58: #{tpu_custom_call.1} parent=5 // pred_check_branch
        %1372 = sbr.rel (%p1370) target = $region60
      $region59: #{tpu_custom_call.1} parent=5 // pred_region
        %s1373 = ssub.s32 %s18, 2
        // Predicated region
        $region61: #{tpu_custom_call.1} parent=59 // pred_check
          %p1374 = pneg %p157
        $region62: #{tpu_custom_call.1} parent=59 // pred_check_branch
          %1376 = sbr.rel (%p1374) target = $region64
        $region63: #{tpu_custom_call.1} parent=59 // pred_region
          %s1377 = sand.u32 %s142, 1
          %s1378 = scalar_lea.sflag [#allocation4], %s1377
          %s1379 = sand.u32 %s142, 1
          %s1380 = smul.addr %s1379, 8
          %s1381 = scalar_lea.vmem [#allocation8], %s1380
          %1382 = dma.done %s1378, 128
        $region64: #{tpu_custom_call.1} parent=59 // pred_fallthru
          _
      $region60: #{tpu_custom_call.1} parent=5 // pred_fallthru
        _
    $region6: #{tpu_custom_call.1} parent=1 // loop_footer
      %s22 = sadd.s32 1, %s18
    $region7: #{tpu_custom_call.1} parent=1 // loop_footer_branch
      %17 = sbr.rel target = $region3
    $region8: #{tpu_custom_call.1} parent=1 // loop_exit
      _
    %1383 = vsyncpa [#allocation3], 1
    %s1384 = scalar_lea.sflag [#allocation3], 1
    %1385 = vsyncpa %s1384, 1
    %1386 = vsyncpa [#allocation6], 1
    %1387 = vsyncpa [#allocation4], 1
    %s1388 = scalar_lea.sflag [#allocation4], 1
    %1389 = vsyncpa %s1388, 1

</llo_original>
